<compile_context>
chip_gen: v5e
topology: v5e:2x2
jax: 0.10.0
libtpu: 0.0.40
codegen_flags: <defaults>
</compile_context>

<pallas_src>
import functools

import numpy as np
import jax
import jax.numpy as jnp
from jax.experimental import pallas as pl
from jax.experimental.pallas import tpu as pltpu

# ---------------- small GPT-J config ----------------
VOCAB = 128
N_EMBD = 64
N_HEAD = 4
HEAD = N_EMBD // N_HEAD          # 16
N_LAYER = 2
N_INNER = 4 * N_EMBD             # 256
ROTARY_DIM = 8                   # even, <= head_size
ROPE_THETA = 10000.0
LN_EPS = 1e-5
SEQ = 8
DTYPE = jnp.float32


# ---------------- static rotary pair-swap matrix ----------------
def _build_rot_mat():
    # (x @ ROT)[t, d] = -x[t, d+1] for even d < rotary_dim
    #                 = +x[t, d-1] for odd  d < rotary_dim
    #                 =  0         otherwise
    # so GPT-J interleaved rotary is:  out = x * cosF + (x @ ROT) * sinF
    blk = np.zeros((HEAD, HEAD), np.float32)
    for i in range(0, ROTARY_DIM, 2):
        blk[i + 1, i] = -1.0
        blk[i, i + 1] = 1.0
    full = np.zeros((N_EMBD, N_EMBD), np.float32)
    for h in range(N_HEAD):
        full[h * HEAD:(h + 1) * HEAD, h * HEAD:(h + 1) * HEAD] = blk
    return jnp.asarray(full, dtype=DTYPE)


ROT_MAT = _build_rot_mat()


def rotary_tables(positions):
    # cosF[t, h*D + d] = cos(pos_t * inv_freq[d//2]) for d < rotary_dim else 1
    # sinF[t, h*D + d] = sin(pos_t * inv_freq[d//2]) for d < rotary_dim else 0
    t = positions.shape[0]
    inv_freq = 1.0 / (ROPE_THETA ** (
        jnp.arange(0, ROTARY_DIM, 2, dtype=jnp.float32) / ROTARY_DIM))
    freqs = positions.astype(jnp.float32)[:, None] * inv_freq[None, :]   # [T, rd/2]
    cos = jnp.repeat(jnp.cos(freqs), 2, axis=-1)                          # [T, rd]
    sin = jnp.repeat(jnp.sin(freqs), 2, axis=-1)
    pad = HEAD - ROTARY_DIM
    cos_full = jnp.concatenate([cos, jnp.ones((t, pad), jnp.float32)], axis=-1)
    sin_full = jnp.concatenate([sin, jnp.zeros((t, pad), jnp.float32)], axis=-1)
    cosF = jnp.tile(cos_full, (1, N_HEAD)).astype(DTYPE)                  # [T, H]
    sinF = jnp.tile(sin_full, (1, N_HEAD)).astype(DTYPE)
    return cosF, sinF


# ---------------- the fused Pallas kernel ----------------
def _gptj_fused_kernel(
    x_ref, cos_ref, sin_ref, rot_ref,
    ln1_g_ref, ln1_b_ref,
    q_w_ref, k_w_ref, v_w_ref, out_w_ref,
    fc_in_w_ref, fc_in_b_ref, fc_out_w_ref, fc_out_b_ref,
    lnf_g_ref, lnf_b_ref, lm_w_ref, lm_b_ref,
    hidden_ref, logits_ref,
    h_acc,
    *, scale,
):
    layer = pl.program_id(0)

    @pl.when(layer == 0)
    def _():
        h_acc[...] = x_ref[...].astype(jnp.float32)

    h = h_acc[...]                                   # [T, H] f32 residual stream

    def layer_norm(x, g, b):
        mean = jnp.mean(x, axis=-1, keepdims=True)
        var = jnp.mean((x - mean) ** 2, axis=-1, keepdims=True)
        return (x - mean) * jax.lax.rsqrt(var + LN_EPS) * g + b

    ln1 = layer_norm(h, ln1_g_ref[0], ln1_b_ref[0])  # [T, H]

    # ---------------- attention ----------------
    q = jnp.dot(ln1, q_w_ref[0], preferred_element_type=jnp.float32)   # [T, H]
    k = jnp.dot(ln1, k_w_ref[0], preferred_element_type=jnp.float32)
    v = jnp.dot(ln1, v_w_ref[0], preferred_element_type=jnp.float32)

    # GPT-J interleaved (non-neox) rotary on the first ROTARY_DIM dims of each head.
    cosF = cos_ref[...]
    sinF = sin_ref[...]
    rot = rot_ref[...]
    q = q * cosF + jnp.dot(q, rot, preferred_element_type=jnp.float32) * sinF
    k = k * cosF + jnp.dot(k, rot, preferred_element_type=jnp.float32) * sinF

    t = q.shape[0]
    row = jax.lax.broadcasted_iota(jnp.int32, (t, t), 0)
    col = jax.lax.broadcasted_iota(jnp.int32, (t, t), 1)
    causal = col <= row

    head_outs = []
    for hd in range(N_HEAD):                     # static unroll, all heads in one step
        sl = slice(hd * HEAD, (hd + 1) * HEAD)
        qh, kh, vh = q[:, sl], k[:, sl], v[:, sl]
        s = jnp.dot(qh, kh.T, preferred_element_type=jnp.float32) * scale   # [T, T]
        s = jnp.where(causal, s, -1e30)
        m = jnp.max(s, axis=-1, keepdims=True)
        p = jnp.exp(s - m)
        denom = jnp.sum(p, axis=-1, keepdims=True)
        p = p * pl.reciprocal(denom, approx=True)
        head_outs.append(jnp.dot(p, vh, preferred_element_type=jnp.float32))
    attn = jnp.concatenate(head_outs, axis=-1)                              # [T, H]
    attn_out = jnp.dot(attn, out_w_ref[0], preferred_element_type=jnp.float32)

    # ---------------- mlp: fc_in -> gelu_new (fused epilogue) -> fc_out ----------------
    m1 = jnp.dot(ln1, fc_in_w_ref[0], preferred_element_type=jnp.float32) + fc_in_b_ref[0]
    c = 0.7978845608028654          # sqrt(2/pi)
    m1 = 0.5 * m1 * (1.0 + jnp.tanh(c * (m1 + 0.044715 * m1 * m1 * m1)))
    mlp_out = jnp.dot(m1, fc_out_w_ref[0], preferred_element_type=jnp.float32) + fc_out_b_ref[0]

    # parallel attention + MLP block, residual add
    h_new = attn_out + mlp_out + h
    h_acc[...] = h_new

    # ---------------- final ln_f + lm_head (last layer only) ----------------
    @pl.when(layer == pl.num_programs(0) - 1)
    def _():
        hf = layer_norm(h_new, lnf_g_ref[...], lnf_b_ref[...])
        hidden_ref[...] = hf.astype(hidden_ref.dtype)
        logits = jnp.dot(hf, lm_w_ref[...], preferred_element_type=jnp.float32) + lm_b_ref[...]
        logits_ref[...] = logits.astype(logits_ref.dtype)


def gptj_fused_call(x, cosF, sinF, rot, p):
    T = x.shape[0]
    kern = functools.partial(_gptj_fused_kernel, scale=HEAD ** -0.5)

    const2 = lambda l: (0, 0)
    layer3 = lambda l: (l, 0, 0)

    grid_spec = pltpu.PrefetchScalarGridSpec(
        num_scalar_prefetch=0,
        grid=(N_LAYER,),
        in_specs=[
            pl.BlockSpec((T, N_EMBD), const2),            # x (embedded tokens)
            pl.BlockSpec((T, N_EMBD), const2),            # cosF
            pl.BlockSpec((T, N_EMBD), const2),            # sinF
            pl.BlockSpec((N_EMBD, N_EMBD), const2),       # rotary pair-swap matrix
            pl.BlockSpec((1, 1, N_EMBD), layer3),         # ln1_g
            pl.BlockSpec((1, 1, N_EMBD), layer3),         # ln1_b
            pl.BlockSpec((1, N_EMBD, N_EMBD), layer3),    # q_w
            pl.BlockSpec((1, N_EMBD, N_EMBD), layer3),    # k_w
            pl.BlockSpec((1, N_EMBD, N_EMBD), layer3),    # v_w
            pl.BlockSpec((1, N_EMBD, N_EMBD), layer3),    # out_w
            pl.BlockSpec((1, N_EMBD, N_INNER), layer3),   # fc_in_w
            pl.BlockSpec((1, 1, N_INNER), layer3),        # fc_in_b
            pl.BlockSpec((1, N_INNER, N_EMBD), layer3),   # fc_out_w
            pl.BlockSpec((1, 1, N_EMBD), layer3),         # fc_out_b
            pl.BlockSpec((1, N_EMBD), const2),            # lnf_g
            pl.BlockSpec((1, N_EMBD), const2),            # lnf_b
            pl.BlockSpec((N_EMBD, VOCAB), const2),        # lm_head_w
            pl.BlockSpec((1, VOCAB), const2),             # lm_head_b
        ],
        out_specs=[
            pl.BlockSpec((T, N_EMBD), const2),            # hidden_states
            pl.BlockSpec((T, VOCAB), const2),             # logits (lane-dense, 128)
        ],
        scratch_shapes=[pltpu.VMEM((T, N_EMBD), jnp.float32)],   # residual carry
    )
    return pl.pallas_call(
        kern,
        out_shape=(jax.ShapeDtypeStruct((T, N_EMBD), DTYPE),
                   jax.ShapeDtypeStruct((T, VOCAB), DTYPE)),
        grid_spec=grid_spec,
        compiler_params=pltpu.CompilerParams(
            dimension_semantics=("arbitrary",)),
    )(x, cosF, sinF, rot,
      p['ln1_g'], p['ln1_b'],
      p['q_w'], p['k_w'], p['v_w'], p['out_w'],
      p['fc_in_w'], p['fc_in_b'], p['fc_out_w'], p['fc_out_b'],
      p['lnf_g'], p['lnf_b'], p['lm_head_w'], p['lm_head_b'])


# ---------------- parameter init (layer-stacked layout) ----------------
def init_params(key):
    std = 0.02

    def dense(k, shape):
        return (std * jax.random.normal(k, shape)).astype(DTYPE)

    keys = iter(jax.random.split(key, 16))
    params = dict(
        wte=dense(next(keys), (VOCAB, N_EMBD)),
        ln1_g=jnp.ones((N_LAYER, 1, N_EMBD), DTYPE),
        ln1_b=jnp.zeros((N_LAYER, 1, N_EMBD), DTYPE),
        q_w=dense(next(keys), (N_LAYER, N_EMBD, N_EMBD)),       # qkv_proj (no bias), split
        k_w=dense(next(keys), (N_LAYER, N_EMBD, N_EMBD)),
        v_w=dense(next(keys), (N_LAYER, N_EMBD, N_EMBD)),
        out_w=dense(next(keys), (N_LAYER, N_EMBD, N_EMBD)),     # out_proj (no bias)
        fc_in_w=dense(next(keys), (N_LAYER, N_EMBD, N_INNER)),
        fc_in_b=dense(next(keys), (N_LAYER, 1, N_INNER)),
        fc_out_w=dense(next(keys), (N_LAYER, N_INNER, N_EMBD)),
        fc_out_b=dense(next(keys), (N_LAYER, 1, N_EMBD)),
        lnf_g=jnp.ones((1, N_EMBD), DTYPE),
        lnf_b=jnp.zeros((1, N_EMBD), DTYPE),
        lm_head_w=dense(next(keys), (N_EMBD, VOCAB)),
        lm_head_b=dense(next(keys), (1, VOCAB)),
    )
    return params


# ---------------- GPT-J forward ----------------
def gptj_forward(params, input_ids, positions):
    # wte embedding gather + rotary table trig kept as plain-JAX glue.
    x = params['wte'][input_ids]                   # [T, H]
    cosF, sinF = rotary_tables(positions)          # [T, H] each
    hidden_states, logits = gptj_fused_call(x, cosF, sinF, ROT_MAT, params)
    return hidden_states, logits

# TODO(synk): vLLM KV-cache / paged attention and tensor/pipeline parallel sharding
# are runtime infrastructure and are not modeled; single-sequence causal prefill only.


if __name__ == "__main__":
    key = jax.random.PRNGKey(0)
    pkey, ikey = jax.random.split(key)
    params = init_params(pkey)

    input_ids = jax.random.randint(ikey, (SEQ,), 0, VOCAB, dtype=jnp.int32)
    positions = jnp.arange(SEQ, dtype=jnp.int32)

    fwd = jax.jit(gptj_forward)
    hidden_states, logits = fwd(params, input_ids, positions)
    jax.block_until_ready((hidden_states, logits))

    assert hidden_states.shape == (SEQ, N_EMBD)
    assert logits.shape == (SEQ, VOCAB)
    assert bool(jnp.all(jnp.isfinite(hidden_states)))
    assert bool(jnp.all(jnp.isfinite(logits)))
    print("KERNEL_OK")
</pallas_src>

<mosaic_0001>
module attributes {stable_mosaic.version = 11 : i64} {
  func.func @_gptj_fused_kernel(%arg0: i32, %arg1: memref<8x64xf32, #tpu.memory_space<vmem>>, %arg2: memref<8x64xf32, #tpu.memory_space<vmem>>, %arg3: memref<8x64xf32, #tpu.memory_space<vmem>>, %arg4: memref<64x64xf32, #tpu.memory_space<vmem>>, %arg5: memref<1x1x64xf32, #tpu.memory_space<vmem>>, %arg6: memref<1x1x64xf32, #tpu.memory_space<vmem>>, %arg7: memref<1x64x64xf32, #tpu.memory_space<vmem>>, %arg8: memref<1x64x64xf32, #tpu.memory_space<vmem>>, %arg9: memref<1x64x64xf32, #tpu.memory_space<vmem>>, %arg10: memref<1x64x64xf32, #tpu.memory_space<vmem>>, %arg11: memref<1x64x256xf32, #tpu.memory_space<vmem>>, %arg12: memref<1x1x256xf32, #tpu.memory_space<vmem>>, %arg13: memref<1x256x64xf32, #tpu.memory_space<vmem>>, %arg14: memref<1x1x64xf32, #tpu.memory_space<vmem>>, %arg15: memref<1x64xf32, #tpu.memory_space<vmem>>, %arg16: memref<1x64xf32, #tpu.memory_space<vmem>>, %arg17: memref<64x128xf32, #tpu.memory_space<vmem>>, %arg18: memref<1x128xf32, #tpu.memory_space<vmem>>, %arg19: memref<8x64xf32, #tpu.memory_space<vmem>>, %arg20: memref<8x128xf32, #tpu.memory_space<vmem>>, %arg21: memref<8x64xf32, #tpu.memory_space<vmem>>) attributes {dimension_semantics = [#tpu.dimension_semantics<arbitrary>], iteration_bounds = array<i64: 2>, scalar_prefetch = 0 : i64, scratch_operands = 1 : i64, tpu.core_type = #tpu.core_type<tc>, window_params = [{pipeline_mode = #tpu.pipeline_mode<synchronous>, transform_indices = @transform_0, window_bounds = array<i64: 8, 64>}, {pipeline_mode = #tpu.pipeline_mode<synchronous>, transform_indices = @transform_1, window_bounds = array<i64: 8, 64>}, {pipeline_mode = #tpu.pipeline_mode<synchronous>, transform_indices = @transform_2, window_bounds = array<i64: 8, 64>}, {pipeline_mode = #tpu.pipeline_mode<synchronous>, transform_indices = @transform_3, window_bounds = array<i64: 64, 64>}, {transform_indices = @transform_4, window_bounds = array<i64: 1, 1, 64>}, {transform_indices = @transform_5, window_bounds = array<i64: 1, 1, 64>}, {transform_indices = @transform_6, window_bounds = array<i64: 1, 64, 64>}, {transform_indices = @transform_7, window_bounds = array<i64: 1, 64, 64>}, {transform_indices = @transform_8, window_bounds = array<i64: 1, 64, 64>}, {transform_indices = @transform_9, window_bounds = array<i64: 1, 64, 64>}, {transform_indices = @transform_10, window_bounds = array<i64: 1, 64, 256>}, {transform_indices = @transform_11, window_bounds = array<i64: 1, 1, 256>}, {transform_indices = @transform_12, window_bounds = array<i64: 1, 256, 64>}, {transform_indices = @transform_13, window_bounds = array<i64: 1, 1, 64>}, {pipeline_mode = #tpu.pipeline_mode<synchronous>, transform_indices = @transform_14, window_bounds = array<i64: 1, 64>}, {pipeline_mode = #tpu.pipeline_mode<synchronous>, transform_indices = @transform_15, window_bounds = array<i64: 1, 64>}, {pipeline_mode = #tpu.pipeline_mode<synchronous>, transform_indices = @transform_16, window_bounds = array<i64: 64, 128>}, {pipeline_mode = #tpu.pipeline_mode<synchronous>, transform_indices = @transform_17, window_bounds = array<i64: 1, 128>}, {pipeline_mode = #tpu.pipeline_mode<synchronous>, transform_indices = @transform_18, window_bounds = array<i64: 8, 64>}, {pipeline_mode = #tpu.pipeline_mode<synchronous>, transform_indices = @transform_19, window_bounds = array<i64: 8, 128>}]} {
    %c0_i32 = arith.constant 0 : i32
    %0 = arith.cmpi eq, %arg0, %c0_i32 : i32
    %1 = arith.extui %0 : i1 to i32
    %c0_i32_0 = arith.constant 0 : i32
    %2 = arith.cmpi ne, %1, %c0_i32_0 : i32
    scf.if %2 {
      %c0_81 = arith.constant 0 : index
      %c0_82 = arith.constant 0 : index
      %170 = vector.load %arg1[%c0_81, %c0_82] : memref<8x64xf32, #tpu.memory_space<vmem>>, vector<8x64xf32>
      %c0_83 = arith.constant 0 : index
      %c0_84 = arith.constant 0 : index
      %171 = vector.load %arg21[%c0_83, %c0_84] : memref<8x64xf32, #tpu.memory_space<vmem>>, vector<8x64xf32>
      tpu.vector_store %arg21[%c0_83, %c0_84], %170 {strides = array<i32>} : memref<8x64xf32, #tpu.memory_space<vmem>>, vector<8x64xf32>,
    } else {
    }
    %c0 = arith.constant 0 : index
    %c0_1 = arith.constant 0 : index
    %3 = vector.load %arg21[%c0, %c0_1] : memref<8x64xf32, #tpu.memory_space<vmem>>, vector<8x64xf32>
    %c0_2 = arith.constant 0 : index
    %c0_3 = arith.constant 0 : index
    %c0_4 = arith.constant 0 : index
    %4 = vector.load %arg5[%c0_2, %c0_3, %c0_4] : memref<1x1x64xf32, #tpu.memory_space<vmem>>, vector<1x1x64xf32>
    %5 = vector.shape_cast %4 : vector<1x1x64xf32> to vector<1x64xf32>
    %c0_5 = arith.constant 0 : index
    %c0_6 = arith.constant 0 : index
    %c0_7 = arith.constant 0 : index
    %6 = vector.load %arg6[%c0_5, %c0_6, %c0_7] : memref<1x1x64xf32, #tpu.memory_space<vmem>>, vector<1x1x64xf32>
    %7 = vector.shape_cast %6 : vector<1x1x64xf32> to vector<1x64xf32>
    %cst = arith.constant dense<0.000000e+00> : vector<8xf32>
    %8 = vector.multi_reduction <add>, %3, %cst [1] : vector<8x64xf32> to vector<8xf32>
    %9 = vector.shape_cast %8 : vector<8xf32> to vector<8x1xf32>
    %cst_8 = arith.constant 6.400000e+01 : f32
    %10 = vector.broadcast %cst_8 : f32 to vector<8x1xf32>
    %11 = arith.divf %9, %10 : vector<8x1xf32>
    %12 = vector.broadcast %11 : vector<8x1xf32> to vector<8x64xf32>
    %13 = arith.subf %3, %12 : vector<8x64xf32>
    %14 = arith.mulf %13, %13 : vector<8x64xf32>
    %cst_9 = arith.constant dense<0.000000e+00> : vector<8xf32>
    %15 = vector.multi_reduction <add>, %14, %cst_9 [1] : vector<8x64xf32> to vector<8xf32>
    %16 = vector.shape_cast %15 : vector<8xf32> to vector<8x1xf32>
    %cst_10 = arith.constant 6.400000e+01 : f32
    %17 = vector.broadcast %cst_10 : f32 to vector<8x1xf32>
    %18 = arith.divf %16, %17 : vector<8x1xf32>
    %19 = vector.broadcast %11 : vector<8x1xf32> to vector<8x64xf32>
    %20 = arith.subf %3, %19 : vector<8x64xf32>
    %cst_11 = arith.constant 9.99999974E-6 : f32
    %21 = vector.broadcast %cst_11 : f32 to vector<8x1xf32>
    %22 = arith.addf %18, %21 : vector<8x1xf32>
    %23 = math.rsqrt %22 : vector<8x1xf32>
    %24 = vector.broadcast %23 : vector<8x1xf32> to vector<8x64xf32>
    %25 = arith.mulf %20, %24 : vector<8x64xf32>
    %26 = vector.broadcast %5 : vector<1x64xf32> to vector<8x64xf32>
    %27 = arith.mulf %25, %26 : vector<8x64xf32>
    %28 = vector.broadcast %7 : vector<1x64xf32> to vector<8x64xf32>
    %29 = arith.addf %27, %28 : vector<8x64xf32>
    %c0_12 = arith.constant 0 : index
    %c0_13 = arith.constant 0 : index
    %c0_14 = arith.constant 0 : index
    %30 = vector.load %arg7[%c0_12, %c0_13, %c0_14] : memref<1x64x64xf32, #tpu.memory_space<vmem>>, vector<1x64x64xf32>
    %31 = vector.shape_cast %30 : vector<1x64x64xf32> to vector<64x64xf32>
    %cst_15 = arith.constant dense<0.000000e+00> : vector<8x64xf32>
    %32 = tpu.matmul %29, %31, %cst_15 {dimension_numbers = #tpu.dot_dimension_numbers<[1], [0], [0], [1], [0, 0, 1, 1], [], []>} : vector<8x64xf32>, vector<64x64xf32>, vector<8x64xf32> -> vector<8x64xf32>
    %c0_16 = arith.constant 0 : index
    %c0_17 = arith.constant 0 : index
    %c0_18 = arith.constant 0 : index
    %33 = vector.load %arg8[%c0_16, %c0_17, %c0_18] : memref<1x64x64xf32, #tpu.memory_space<vmem>>, vector<1x64x64xf32>
    %34 = vector.shape_cast %33 : vector<1x64x64xf32> to vector<64x64xf32>
    %cst_19 = arith.constant dense<0.000000e+00> : vector<8x64xf32>
    %35 = tpu.matmul %29, %34, %cst_19 {dimension_numbers = #tpu.dot_dimension_numbers<[1], [0], [0], [1], [0, 0, 1, 1], [], []>} : vector<8x64xf32>, vector<64x64xf32>, vector<8x64xf32> -> vector<8x64xf32>
    %c0_20 = arith.constant 0 : index
    %c0_21 = arith.constant 0 : index
    %c0_22 = arith.constant 0 : index
    %36 = vector.load %arg9[%c0_20, %c0_21, %c0_22] : memref<1x64x64xf32, #tpu.memory_space<vmem>>, vector<1x64x64xf32>
    %37 = vector.shape_cast %36 : vector<1x64x64xf32> to vector<64x64xf32>
    %cst_23 = arith.constant dense<0.000000e+00> : vector<8x64xf32>
    %38 = tpu.matmul %29, %37, %cst_23 {dimension_numbers = #tpu.dot_dimension_numbers<[1], [0], [0], [1], [0, 0, 1, 1], [], []>} : vector<8x64xf32>, vector<64x64xf32>, vector<8x64xf32> -> vector<8x64xf32>
    %c0_24 = arith.constant 0 : index
    %c0_25 = arith.constant 0 : index
    %39 = vector.load %arg2[%c0_24, %c0_25] : memref<8x64xf32, #tpu.memory_space<vmem>>, vector<8x64xf32>
    %c0_26 = arith.constant 0 : index
    %c0_27 = arith.constant 0 : index
    %40 = vector.load %arg3[%c0_26, %c0_27] : memref<8x64xf32, #tpu.memory_space<vmem>>, vector<8x64xf32>
    %c0_28 = arith.constant 0 : index
    %c0_29 = arith.constant 0 : index
    %41 = vector.load %arg4[%c0_28, %c0_29] : memref<64x64xf32, #tpu.memory_space<vmem>>, vector<64x64xf32>
    %42 = arith.mulf %32, %39 : vector<8x64xf32>
    %cst_30 = arith.constant dense<0.000000e+00> : vector<8x64xf32>
    %43 = tpu.matmul %32, %41, %cst_30 {dimension_numbers = #tpu.dot_dimension_numbers<[1], [0], [0], [1], [0, 0, 1, 1], [], []>} : vector<8x64xf32>, vector<64x64xf32>, vector<8x64xf32> -> vector<8x64xf32>
    %44 = arith.mulf %43, %40 : vector<8x64xf32>
    %45 = arith.addf %42, %44 : vector<8x64xf32>
    %46 = arith.mulf %35, %39 : vector<8x64xf32>
    %cst_31 = arith.constant dense<0.000000e+00> : vector<8x64xf32>
    %47 = tpu.matmul %35, %41, %cst_31 {dimension_numbers = #tpu.dot_dimension_numbers<[1], [0], [0], [1], [0, 0, 1, 1], [], []>} : vector<8x64xf32>, vector<64x64xf32>, vector<8x64xf32> -> vector<8x64xf32>
    %48 = arith.mulf %47, %40 : vector<8x64xf32>
    %49 = arith.addf %46, %48 : vector<8x64xf32>
    %50 = tpu.iota {dimensions = array<i32: 0>} : vector<8x8xi32>
    %51 = tpu.iota {dimensions = array<i32: 1>} : vector<8x8xi32>
    %52 = arith.cmpi sle, %51, %50 : vector<8x8xi32>
    %53 = vector.extract_strided_slice %45 {offsets = [0, 0], sizes = [8, 16], strides = [1, 1]} : vector<8x64xf32> to vector<8x16xf32>
    %54 = vector.extract_strided_slice %49 {offsets = [0, 0], sizes = [8, 16], strides = [1, 1]} : vector<8x64xf32> to vector<8x16xf32>
    %55 = vector.extract_strided_slice %38 {offsets = [0, 0], sizes = [8, 16], strides = [1, 1]} : vector<8x64xf32> to vector<8x16xf32>
    %56 = tpu.transpose %54, [1, 0] : vector<8x16xf32> -> vector<16x8xf32>
    %cst_32 = arith.constant dense<0.000000e+00> : vector<8x8xf32>
    %57 = tpu.matmul %53, %56, %cst_32 {dimension_numbers = #tpu.dot_dimension_numbers<[1], [0], [0], [1], [0, 0, 1, 1], [], []>} : vector<8x16xf32>, vector<16x8xf32>, vector<8x8xf32> -> vector<8x8xf32>
    %cst_33 = arith.constant 2.500000e-01 : f32
    %58 = vector.broadcast %cst_33 : f32 to vector<8x8xf32>
    %59 = arith.mulf %57, %58 : vector<8x8xf32>
    %cst_34 = arith.constant -1.000000e+30 : f32
    %60 = vector.broadcast %cst_34 : f32 to vector<8x8xf32>
    %61 = arith.select %52, %59, %60 : vector<8x8xi1>, vector<8x8xf32>
    %cst_35 = arith.constant dense<0xFF800000> : vector<8xf32>
    %62 = vector.multi_reduction <maximumf>, %61, %cst_35 [1] : vector<8x8xf32> to vector<8xf32>
    %63 = vector.shape_cast %62 : vector<8xf32> to vector<8x1xf32>
    %64 = vector.broadcast %63 : vector<8x1xf32> to vector<8x8xf32>
    %65 = arith.subf %61, %64 : vector<8x8xf32>
    %66 = math.exp %65 : vector<8x8xf32>
    %cst_36 = arith.constant dense<0.000000e+00> : vector<8xf32>
    %67 = vector.multi_reduction <add>, %66, %cst_36 [1] : vector<8x8xf32> to vector<8xf32>
    %68 = vector.shape_cast %67 : vector<8xf32> to vector<8x1xf32>
    %69 = tpu.reciprocal %68 {approx = true} : vector<8x1xf32> -> vector<8x1xf32>
    %70 = vector.broadcast %69 : vector<8x1xf32> to vector<8x8xf32>
    %71 = arith.mulf %66, %70 : vector<8x8xf32>
    %cst_37 = arith.constant dense<0.000000e+00> : vector<8x16xf32>
    %72 = tpu.matmul %71, %55, %cst_37 {dimension_numbers = #tpu.dot_dimension_numbers<[1], [0], [0], [1], [0, 0, 1, 1], [], []>} : vector<8x8xf32>, vector<8x16xf32>, vector<8x16xf32> -> vector<8x16xf32>
    %73 = vector.extract_strided_slice %45 {offsets = [0, 16], sizes = [8, 16], strides = [1, 1]} : vector<8x64xf32> to vector<8x16xf32>
    %74 = vector.extract_strided_slice %49 {offsets = [0, 16], sizes = [8, 16], strides = [1, 1]} : vector<8x64xf32> to vector<8x16xf32>
    %75 = vector.extract_strided_slice %38 {offsets = [0, 16], sizes = [8, 16], strides = [1, 1]} : vector<8x64xf32> to vector<8x16xf32>
    %76 = tpu.transpose %74, [1, 0] : vector<8x16xf32> -> vector<16x8xf32>
    %cst_38 = arith.constant dense<0.000000e+00> : vector<8x8xf32>
    %77 = tpu.matmul %73, %76, %cst_38 {dimension_numbers = #tpu.dot_dimension_numbers<[1], [0], [0], [1], [0, 0, 1, 1], [], []>} : vector<8x16xf32>, vector<16x8xf32>, vector<8x8xf32> -> vector<8x8xf32>
    %cst_39 = arith.constant 2.500000e-01 : f32
    %78 = vector.broadcast %cst_39 : f32 to vector<8x8xf32>
    %79 = arith.mulf %77, %78 : vector<8x8xf32>
    %cst_40 = arith.constant -1.000000e+30 : f32
    %80 = vector.broadcast %cst_40 : f32 to vector<8x8xf32>
    %81 = arith.select %52, %79, %80 : vector<8x8xi1>, vector<8x8xf32>
    %cst_41 = arith.constant dense<0xFF800000> : vector<8xf32>
    %82 = vector.multi_reduction <maximumf>, %81, %cst_41 [1] : vector<8x8xf32> to vector<8xf32>
    %83 = vector.shape_cast %82 : vector<8xf32> to vector<8x1xf32>
    %84 = vector.broadcast %83 : vector<8x1xf32> to vector<8x8xf32>
    %85 = arith.subf %81, %84 : vector<8x8xf32>
    %86 = math.exp %85 : vector<8x8xf32>
    %cst_42 = arith.constant dense<0.000000e+00> : vector<8xf32>
    %87 = vector.multi_reduction <add>, %86, %cst_42 [1] : vector<8x8xf32> to vector<8xf32>
    %88 = vector.shape_cast %87 : vector<8xf32> to vector<8x1xf32>
    %89 = tpu.reciprocal %88 {approx = true} : vector<8x1xf32> -> vector<8x1xf32>
    %90 = vector.broadcast %89 : vector<8x1xf32> to vector<8x8xf32>
    %91 = arith.mulf %86, %90 : vector<8x8xf32>
    %cst_43 = arith.constant dense<0.000000e+00> : vector<8x16xf32>
    %92 = tpu.matmul %91, %75, %cst_43 {dimension_numbers = #tpu.dot_dimension_numbers<[1], [0], [0], [1], [0, 0, 1, 1], [], []>} : vector<8x8xf32>, vector<8x16xf32>, vector<8x16xf32> -> vector<8x16xf32>
    %93 = vector.extract_strided_slice %45 {offsets = [0, 32], sizes = [8, 16], strides = [1, 1]} : vector<8x64xf32> to vector<8x16xf32>
    %94 = vector.extract_strided_slice %49 {offsets = [0, 32], sizes = [8, 16], strides = [1, 1]} : vector<8x64xf32> to vector<8x16xf32>
    %95 = vector.extract_strided_slice %38 {offsets = [0, 32], sizes = [8, 16], strides = [1, 1]} : vector<8x64xf32> to vector<8x16xf32>
    %96 = tpu.transpose %94, [1, 0] : vector<8x16xf32> -> vector<16x8xf32>
    %cst_44 = arith.constant dense<0.000000e+00> : vector<8x8xf32>
    %97 = tpu.matmul %93, %96, %cst_44 {dimension_numbers = #tpu.dot_dimension_numbers<[1], [0], [0], [1], [0, 0, 1, 1], [], []>} : vector<8x16xf32>, vector<16x8xf32>, vector<8x8xf32> -> vector<8x8xf32>
    %cst_45 = arith.constant 2.500000e-01 : f32
    %98 = vector.broadcast %cst_45 : f32 to vector<8x8xf32>
    %99 = arith.mulf %97, %98 : vector<8x8xf32>
    %cst_46 = arith.constant -1.000000e+30 : f32
    %100 = vector.broadcast %cst_46 : f32 to vector<8x8xf32>
    %101 = arith.select %52, %99, %100 : vector<8x8xi1>, vector<8x8xf32>
    %cst_47 = arith.constant dense<0xFF800000> : vector<8xf32>
    %102 = vector.multi_reduction <maximumf>, %101, %cst_47 [1] : vector<8x8xf32> to vector<8xf32>
    %103 = vector.shape_cast %102 : vector<8xf32> to vector<8x1xf32>
    %104 = vector.broadcast %103 : vector<8x1xf32> to vector<8x8xf32>
    %105 = arith.subf %101, %104 : vector<8x8xf32>
    %106 = math.exp %105 : vector<8x8xf32>
    %cst_48 = arith.constant dense<0.000000e+00> : vector<8xf32>
    %107 = vector.multi_reduction <add>, %106, %cst_48 [1] : vector<8x8xf32> to vector<8xf32>
    %108 = vector.shape_cast %107 : vector<8xf32> to vector<8x1xf32>
    %109 = tpu.reciprocal %108 {approx = true} : vector<8x1xf32> -> vector<8x1xf32>
    %110 = vector.broadcast %109 : vector<8x1xf32> to vector<8x8xf32>
    %111 = arith.mulf %106, %110 : vector<8x8xf32>
    %cst_49 = arith.constant dense<0.000000e+00> : vector<8x16xf32>
    %112 = tpu.matmul %111, %95, %cst_49 {dimension_numbers = #tpu.dot_dimension_numbers<[1], [0], [0], [1], [0, 0, 1, 1], [], []>} : vector<8x8xf32>, vector<8x16xf32>, vector<8x16xf32> -> vector<8x16xf32>
    %113 = vector.extract_strided_slice %45 {offsets = [0, 48], sizes = [8, 16], strides = [1, 1]} : vector<8x64xf32> to vector<8x16xf32>
    %114 = vector.extract_strided_slice %49 {offsets = [0, 48], sizes = [8, 16], strides = [1, 1]} : vector<8x64xf32> to vector<8x16xf32>
    %115 = vector.extract_strided_slice %38 {offsets = [0, 48], sizes = [8, 16], strides = [1, 1]} : vector<8x64xf32> to vector<8x16xf32>
    %116 = tpu.transpose %114, [1, 0] : vector<8x16xf32> -> vector<16x8xf32>
    %cst_50 = arith.constant dense<0.000000e+00> : vector<8x8xf32>
    %117 = tpu.matmul %113, %116, %cst_50 {dimension_numbers = #tpu.dot_dimension_numbers<[1], [0], [0], [1], [0, 0, 1, 1], [], []>} : vector<8x16xf32>, vector<16x8xf32>, vector<8x8xf32> -> vector<8x8xf32>
    %cst_51 = arith.constant 2.500000e-01 : f32
    %118 = vector.broadcast %cst_51 : f32 to vector<8x8xf32>
    %119 = arith.mulf %117, %118 : vector<8x8xf32>
    %cst_52 = arith.constant -1.000000e+30 : f32
    %120 = vector.broadcast %cst_52 : f32 to vector<8x8xf32>
    %121 = arith.select %52, %119, %120 : vector<8x8xi1>, vector<8x8xf32>
    %cst_53 = arith.constant dense<0xFF800000> : vector<8xf32>
    %122 = vector.multi_reduction <maximumf>, %121, %cst_53 [1] : vector<8x8xf32> to vector<8xf32>
    %123 = vector.shape_cast %122 : vector<8xf32> to vector<8x1xf32>
    %124 = vector.broadcast %123 : vector<8x1xf32> to vector<8x8xf32>
    %125 = arith.subf %121, %124 : vector<8x8xf32>
    %126 = math.exp %125 : vector<8x8xf32>
    %cst_54 = arith.constant dense<0.000000e+00> : vector<8xf32>
    %127 = vector.multi_reduction <add>, %126, %cst_54 [1] : vector<8x8xf32> to vector<8xf32>
    %128 = vector.shape_cast %127 : vector<8xf32> to vector<8x1xf32>
    %129 = tpu.reciprocal %128 {approx = true} : vector<8x1xf32> -> vector<8x1xf32>
    %130 = vector.broadcast %129 : vector<8x1xf32> to vector<8x8xf32>
    %131 = arith.mulf %126, %130 : vector<8x8xf32>
    %cst_55 = arith.constant dense<0.000000e+00> : vector<8x16xf32>
    %132 = tpu.matmul %131, %115, %cst_55 {dimension_numbers = #tpu.dot_dimension_numbers<[1], [0], [0], [1], [0, 0, 1, 1], [], []>} : vector<8x8xf32>, vector<8x16xf32>, vector<8x16xf32> -> vector<8x16xf32>
    %133 = tpu.concatenate %72, %92, %112, %132 in 1 : vector<8x16xf32>, vector<8x16xf32>, vector<8x16xf32>, vector<8x16xf32> -> vector<8x64xf32>
    %c0_56 = arith.constant 0 : index
    %c0_57 = arith.constant 0 : index
    %c0_58 = arith.constant 0 : index
    %134 = vector.load %arg10[%c0_56, %c0_57, %c0_58] : memref<1x64x64xf32, #tpu.memory_space<vmem>>, vector<1x64x64xf32>
    %135 = vector.shape_cast %134 : vector<1x64x64xf32> to vector<64x64xf32>
    %cst_59 = arith.constant dense<0.000000e+00> : vector<8x64xf32>
    %136 = tpu.matmul %133, %135, %cst_59 {dimension_numbers = #tpu.dot_dimension_numbers<[1], [0], [0], [1], [0, 0, 1, 1], [], []>} : vector<8x64xf32>, vector<64x64xf32>, vector<8x64xf32> -> vector<8x64xf32>
    %c0_60 = arith.constant 0 : index
    %c0_61 = arith.constant 0 : index
    %c0_62 = arith.constant 0 : index
    %137 = vector.load %arg11[%c0_60, %c0_61, %c0_62] : memref<1x64x256xf32, #tpu.memory_space<vmem>>, vector<1x64x256xf32>
    %138 = vector.shape_cast %137 : vector<1x64x256xf32> to vector<64x256xf32>
    %cst_63 = arith.constant dense<0.000000e+00> : vector<8x256xf32>
    %139 = tpu.matmul %29, %138, %cst_63 {dimension_numbers = #tpu.dot_dimension_numbers<[1], [0], [0], [1], [0, 0, 1, 1], [], []>} : vector<8x64xf32>, vector<64x256xf32>, vector<8x256xf32> -> vector<8x256xf32>
    %c0_64 = arith.constant 0 : index
    %c0_65 = arith.constant 0 : index
    %c0_66 = arith.constant 0 : index
    %140 = vector.load %arg12[%c0_64, %c0_65, %c0_66] : memref<1x1x256xf32, #tpu.memory_space<vmem>>, vector<1x1x256xf32>
    %141 = vector.shape_cast %140 : vector<1x1x256xf32> to vector<1x256xf32>
    %142 = vector.broadcast %141 : vector<1x256xf32> to vector<8x256xf32>
    %143 = arith.addf %139, %142 : vector<8x256xf32>
    %cst_67 = arith.constant 5.000000e-01 : f32
    %144 = vector.broadcast %cst_67 : f32 to vector<8x256xf32>
    %145 = arith.mulf %144, %143 : vector<8x256xf32>
    %cst_68 = arith.constant 4.471500e-02 : f32
    %146 = vector.broadcast %cst_68 : f32 to vector<8x256xf32>
    %147 = arith.mulf %146, %143 : vector<8x256xf32>
    %148 = arith.mulf %147, %143 : vector<8x256xf32>
    %149 = arith.mulf %148, %143 : vector<8x256xf32>
    %150 = arith.addf %143, %149 : vector<8x256xf32>
    %cst_69 = arith.constant 0.797884583 : f32
    %151 = vector.broadcast %cst_69 : f32 to vector<8x256xf32>
    %152 = arith.mulf %151, %150 : vector<8x256xf32>
    %153 = math.tanh %152 : vector<8x256xf32>
    %cst_70 = arith.constant 1.000000e+00 : f32
    %154 = vector.broadcast %cst_70 : f32 to vector<8x256xf32>
    %155 = arith.addf %154, %153 : vector<8x256xf32>
    %156 = arith.mulf %145, %155 : vector<8x256xf32>
    %c0_71 = arith.constant 0 : index
    %c0_72 = arith.constant 0 : index
    %c0_73 = arith.constant 0 : index
    %157 = vector.load %arg13[%c0_71, %c0_72, %c0_73] : memref<1x256x64xf32, #tpu.memory_space<vmem>>, vector<1x256x64xf32>
    %158 = vector.shape_cast %157 : vector<1x256x64xf32> to vector<256x64xf32>
    %cst_74 = arith.constant dense<0.000000e+00> : vector<8x64xf32>
    %159 = tpu.matmul %156, %158, %cst_74 {dimension_numbers = #tpu.dot_dimension_numbers<[1], [0], [0], [1], [0, 0, 1, 1], [], []>} : vector<8x256xf32>, vector<256x64xf32>, vector<8x64xf32> -> vector<8x64xf32>
    %c0_75 = arith.constant 0 : index
    %c0_76 = arith.constant 0 : index
    %c0_77 = arith.constant 0 : index
    %160 = vector.load %arg14[%c0_75, %c0_76, %c0_77] : memref<1x1x64xf32, #tpu.memory_space<vmem>>, vector<1x1x64xf32>
    %161 = vector.shape_cast %160 : vector<1x1x64xf32> to vector<1x64xf32>
    %162 = vector.broadcast %161 : vector<1x64xf32> to vector<8x64xf32>
    %163 = arith.addf %159, %162 : vector<8x64xf32>
    %164 = arith.addf %136, %163 : vector<8x64xf32>
    %165 = arith.addf %164, %3 : vector<8x64xf32>
    %c0_78 = arith.constant 0 : index
    %c0_79 = arith.constant 0 : index
    %166 = vector.load %arg21[%c0_78, %c0_79] : memref<8x64xf32, #tpu.memory_space<vmem>>, vector<8x64xf32>
    tpu.vector_store %arg21[%c0_78, %c0_79], %165 {strides = array<i32>} : memref<8x64xf32, #tpu.memory_space<vmem>>, vector<8x64xf32>,
    %c1_i32 = arith.constant 1 : i32
    %167 = arith.cmpi eq, %arg0, %c1_i32 : i32
    %168 = arith.extui %167 : i1 to i32
    %c0_i32_80 = arith.constant 0 : i32
    %169 = arith.cmpi ne, %168, %c0_i32_80 : i32
    scf.if %169 {
      %c0_81 = arith.constant 0 : index
      %c0_82 = arith.constant 0 : index
      %170 = vector.load %arg15[%c0_81, %c0_82] : memref<1x64xf32, #tpu.memory_space<vmem>>, vector<1x64xf32>
      %c0_83 = arith.constant 0 : index
      %c0_84 = arith.constant 0 : index
      %171 = vector.load %arg16[%c0_83, %c0_84] : memref<1x64xf32, #tpu.memory_space<vmem>>, vector<1x64xf32>
      %cst_85 = arith.constant dense<0.000000e+00> : vector<8xf32>
      %172 = vector.multi_reduction <add>, %165, %cst_85 [1] : vector<8x64xf32> to vector<8xf32>
      %173 = vector.shape_cast %172 : vector<8xf32> to vector<8x1xf32>
      %cst_86 = arith.constant 6.400000e+01 : f32
      %174 = vector.broadcast %cst_86 : f32 to vector<8x1xf32>
      %175 = arith.divf %173, %174 : vector<8x1xf32>
      %176 = vector.broadcast %175 : vector<8x1xf32> to vector<8x64xf32>
      %177 = arith.subf %165, %176 : vector<8x64xf32>
      %178 = arith.mulf %177, %177 : vector<8x64xf32>
      %cst_87 = arith.constant dense<0.000000e+00> : vector<8xf32>
      %179 = vector.multi_reduction <add>, %178, %cst_87 [1] : vector<8x64xf32> to vector<8xf32>
      %180 = vector.shape_cast %179 : vector<8xf32> to vector<8x1xf32>
      %cst_88 = arith.constant 6.400000e+01 : f32
      %181 = vector.broadcast %cst_88 : f32 to vector<8x1xf32>
      %182 = arith.divf %180, %181 : vector<8x1xf32>
      %183 = vector.broadcast %175 : vector<8x1xf32> to vector<8x64xf32>
      %184 = arith.subf %165, %183 : vector<8x64xf32>
      %cst_89 = arith.constant 9.99999974E-6 : f32
      %185 = vector.broadcast %cst_89 : f32 to vector<8x1xf32>
      %186 = arith.addf %182, %185 : vector<8x1xf32>
      %187 = math.rsqrt %186 : vector<8x1xf32>
      %188 = vector.broadcast %187 : vector<8x1xf32> to vector<8x64xf32>
      %189 = arith.mulf %184, %188 : vector<8x64xf32>
      %190 = vector.broadcast %170 : vector<1x64xf32> to vector<8x64xf32>
      %191 = arith.mulf %189, %190 : vector<8x64xf32>
      %192 = vector.broadcast %171 : vector<1x64xf32> to vector<8x64xf32>
      %193 = arith.addf %191, %192 : vector<8x64xf32>
      %c0_90 = arith.constant 0 : index
      %c0_91 = arith.constant 0 : index
      %194 = vector.load %arg19[%c0_90, %c0_91] : memref<8x64xf32, #tpu.memory_space<vmem>>, vector<8x64xf32>
      tpu.vector_store %arg19[%c0_90, %c0_91], %193 {strides = array<i32>} : memref<8x64xf32, #tpu.memory_space<vmem>>, vector<8x64xf32>,
      %c0_92 = arith.constant 0 : index
      %c0_93 = arith.constant 0 : index
      %195 = vector.load %arg17[%c0_92, %c0_93] : memref<64x128xf32, #tpu.memory_space<vmem>>, vector<64x128xf32>
      %cst_94 = arith.constant dense<0.000000e+00> : vector<8x128xf32>
      %196 = tpu.matmul %193, %195, %cst_94 {dimension_numbers = #tpu.dot_dimension_numbers<[1], [0], [0], [1], [0, 0, 1, 1], [], []>} : vector<8x64xf32>, vector<64x128xf32>, vector<8x128xf32> -> vector<8x128xf32>
      %c0_95 = arith.constant 0 : index
      %c0_96 = arith.constant 0 : index
      %197 = vector.load %arg18[%c0_95, %c0_96] : memref<1x128xf32, #tpu.memory_space<vmem>>, vector<1x128xf32>
      %198 = vector.broadcast %197 : vector<1x128xf32> to vector<8x128xf32>
      %199 = arith.addf %196, %198 : vector<8x128xf32>
      %c0_97 = arith.constant 0 : index
      %c0_98 = arith.constant 0 : index
      %200 = vector.load %arg20[%c0_97, %c0_98] : memref<8x128xf32, #tpu.memory_space<vmem>>, vector<8x128xf32>
      tpu.vector_store %arg20[%c0_97, %c0_98], %199 {strides = array<i32>} : memref<8x128xf32, #tpu.memory_space<vmem>>, vector<8x128xf32>,
    } else {
    }
    return
  }
  func.func @transform_0(%arg0: i32) -> (i32, i32) {
    %c0_i32 = arith.constant 0 : i32
    %c0_i32_0 = arith.constant 0 : i32
    %c0_i32_1 = arith.constant 0 : i32
    return %c0_i32, %c0_i32_0 : i32, i32
  }
  func.func @transform_1(%arg0: i32) -> (i32, i32) {
    %c0_i32 = arith.constant 0 : i32
    %c0_i32_0 = arith.constant 0 : i32
    %c0_i32_1 = arith.constant 0 : i32
    return %c0_i32, %c0_i32_0 : i32, i32
  }
  func.func @transform_2(%arg0: i32) -> (i32, i32) {
    %c0_i32 = arith.constant 0 : i32
    %c0_i32_0 = arith.constant 0 : i32
    %c0_i32_1 = arith.constant 0 : i32
    return %c0_i32, %c0_i32_0 : i32, i32
  }
  func.func @transform_3(%arg0: i32) -> (i32, i32) {
    %c0_i32 = arith.constant 0 : i32
    %c0_i32_0 = arith.constant 0 : i32
    %c0_i32_1 = arith.constant 0 : i32
    return %c0_i32, %c0_i32_0 : i32, i32
  }
  func.func @transform_4(%arg0: i32) -> (i32, i32, i32) {
    %c0_i32 = arith.constant 0 : i32
    %c0_i32_0 = arith.constant 0 : i32
    %c0_i32_1 = arith.constant 0 : i32
    return %arg0, %c0_i32, %c0_i32_0 : i32, i32, i32
  }
  func.func @transform_5(%arg0: i32) -> (i32, i32, i32) {
    %c0_i32 = arith.constant 0 : i32
    %c0_i32_0 = arith.constant 0 : i32
    %c0_i32_1 = arith.constant 0 : i32
    return %arg0, %c0_i32, %c0_i32_0 : i32, i32, i32
  }
  func.func @transform_6(%arg0: i32) -> (i32, i32, i32) {
    %c0_i32 = arith.constant 0 : i32
    %c0_i32_0 = arith.constant 0 : i32
    %c0_i32_1 = arith.constant 0 : i32
    return %arg0, %c0_i32, %c0_i32_0 : i32, i32, i32
  }
  func.func @transform_7(%arg0: i32) -> (i32, i32, i32) {
    %c0_i32 = arith.constant 0 : i32
    %c0_i32_0 = arith.constant 0 : i32
    %c0_i32_1 = arith.constant 0 : i32
    return %arg0, %c0_i32, %c0_i32_0 : i32, i32, i32
  }
  func.func @transform_8(%arg0: i32) -> (i32, i32, i32) {
    %c0_i32 = arith.constant 0 : i32
    %c0_i32_0 = arith.constant 0 : i32
    %c0_i32_1 = arith.constant 0 : i32
    return %arg0, %c0_i32, %c0_i32_0 : i32, i32, i32
  }
  func.func @transform_9(%arg0: i32) -> (i32, i32, i32) {
    %c0_i32 = arith.constant 0 : i32
    %c0_i32_0 = arith.constant 0 : i32
    %c0_i32_1 = arith.constant 0 : i32
    return %arg0, %c0_i32, %c0_i32_0 : i32, i32, i32
  }
  func.func @transform_10(%arg0: i32) -> (i32, i32, i32) {
    %c0_i32 = arith.constant 0 : i32
    %c0_i32_0 = arith.constant 0 : i32
    %c0_i32_1 = arith.constant 0 : i32
    return %arg0, %c0_i32, %c0_i32_0 : i32, i32, i32
  }
  func.func @transform_11(%arg0: i32) -> (i32, i32, i32) {
    %c0_i32 = arith.constant 0 : i32
    %c0_i32_0 = arith.constant 0 : i32
    %c0_i32_1 = arith.constant 0 : i32
    return %arg0, %c0_i32, %c0_i32_0 : i32, i32, i32
  }
  func.func @transform_12(%arg0: i32) -> (i32, i32, i32) {
    %c0_i32 = arith.constant 0 : i32
    %c0_i32_0 = arith.constant 0 : i32
    %c0_i32_1 = arith.constant 0 : i32
    return %arg0, %c0_i32, %c0_i32_0 : i32, i32, i32
  }
  func.func @transform_13(%arg0: i32) -> (i32, i32, i32) {
    %c0_i32 = arith.constant 0 : i32
    %c0_i32_0 = arith.constant 0 : i32
    %c0_i32_1 = arith.constant 0 : i32
    return %arg0, %c0_i32, %c0_i32_0 : i32, i32, i32
  }
  func.func @transform_14(%arg0: i32) -> (i32, i32) {
    %c0_i32 = arith.constant 0 : i32
    %c0_i32_0 = arith.constant 0 : i32
    %c0_i32_1 = arith.constant 0 : i32
    return %c0_i32, %c0_i32_0 : i32, i32
  }
  func.func @transform_15(%arg0: i32) -> (i32, i32) {
    %c0_i32 = arith.constant 0 : i32
    %c0_i32_0 = arith.constant 0 : i32
    %c0_i32_1 = arith.constant 0 : i32
    return %c0_i32, %c0_i32_0 : i32, i32
  }
  func.func @transform_16(%arg0: i32) -> (i32, i32) {
    %c0_i32 = arith.constant 0 : i32
    %c0_i32_0 = arith.constant 0 : i32
    %c0_i32_1 = arith.constant 0 : i32
    return %c0_i32, %c0_i32_0 : i32, i32
  }
  func.func @transform_17(%arg0: i32) -> (i32, i32) {
    %c0_i32 = arith.constant 0 : i32
    %c0_i32_0 = arith.constant 0 : i32
    %c0_i32_1 = arith.constant 0 : i32
    return %c0_i32, %c0_i32_0 : i32, i32
  }
  func.func @transform_18(%arg0: i32) -> (i32, i32) {
    %c0_i32 = arith.constant 0 : i32
    %c0_i32_0 = arith.constant 0 : i32
    %c0_i32_1 = arith.constant 0 : i32
    return %c0_i32, %c0_i32_0 : i32, i32
  }
  func.func @transform_19(%arg0: i32) -> (i32, i32) {
    %c0_i32 = arith.constant 0 : i32
    %c0_i32_0 = arith.constant 0 : i32
    %c0_i32_1 = arith.constant 0 : i32
    return %c0_i32, %c0_i32_0 : i32, i32
  }
}

</mosaic_0001>

<llo_original>
// kernel: tile.14
$region0: #{tile.14}
  %s0 = inlined_call_operand.vmem [shape: f32[8,4,16], index: 0, kind: input, shape index: {}]
  %s1 = inlined_call_operand.vmem [shape: f32[8,64], index: 1, kind: output, shape index: {}]
  $region1: #{tile.14} parent=0
    #allocation0 [shape = 'u8[32768]{0}', space=vmem, size = 0x8000, scoped, tag = 'scoped mem for input reshape']
    %s3 = ssub.s32 16, 1
    %s4 = scalar_lea.vmem %s0, 28
    %v5 = vld [vmem:[%s4] sm:%s3]
    %s6 = scalar_lea.vmem [#allocation0], 56
    %7 = vst [vmem:[%s6] sm:%s3] %v5
    %s8 = scalar_lea.vmem %s0, 24
    %v9 = vld [vmem:[%s8] sm:%s3]
    %s10 = scalar_lea.vmem [#allocation0], 48
    %11 = vst [vmem:[%s10] sm:%s3] %v9
    %s12 = scalar_lea.vmem %s0, 20
    %v13 = vld [vmem:[%s12] sm:%s3]
    %s14 = scalar_lea.vmem [#allocation0], 40
    %15 = vst [vmem:[%s14] sm:%s3] %v13
    %s16 = scalar_lea.vmem %s0, 16
    %v17 = vld [vmem:[%s16] sm:%s3]
    %s18 = scalar_lea.vmem [#allocation0], 32
    %19 = vst [vmem:[%s18] sm:%s3] %v17
    %s20 = scalar_lea.vmem %s0, 12
    %v21 = vld [vmem:[%s20] sm:%s3]
    %s22 = scalar_lea.vmem [#allocation0], 24
    %23 = vst [vmem:[%s22] sm:%s3] %v21
    %s24 = scalar_lea.vmem %s0, 8
    %v25 = vld [vmem:[%s24] sm:%s3]
    %s26 = scalar_lea.vmem [#allocation0], 16
    %27 = vst [vmem:[%s26] sm:%s3] %v25
    %s28 = scalar_lea.vmem %s0, 4
    %v29 = vld [vmem:[%s28] sm:%s3]
    %s30 = scalar_lea.vmem [#allocation0], 8
    %31 = vst [vmem:[%s30] sm:%s3] %v29
    %v32 = vld [vmem:[%s0] sm:%s3]
    %33 = vst [vmem:[#allocation0] sm:%s3] %v32
    %v34 = vld [vmem:[#allocation0] ss:$8 sm:$0xf]
    %v35 = vld [vmem:[#allocation0] ss:$8 sm:$0xf0]
    %vm36 = vcmask 1047556
    %v37 = vsel %vm36, %v35, %v34
    %vm38 = vcmask 130048
    %39 = vst.msk [vmem:[%s1] sm:$0xff] %vm38, %v37
    %s40 = scalar_lea.vmem [#allocation0], 3
    %v41 = vld [vmem:[%s40] ss:$8 sm:$0xf]
    %s42 = scalar_lea.vmem [#allocation0], 3
    %v43 = vld [vmem:[%s42] ss:$8 sm:$0xf0]
    %vm44 = vcmask 1047556
    %v45 = vsel %vm44, %v43, %v41
    %46 = vrot.lane.b32.xlu0 %v45, 48
    %v47 = vpop.permute.xlu0 %46
    %vm48 = vcmask 523648
    %49 = vst.msk [vmem:[%s1] sm:$0xff] %vm48, %v47
    %s50 = scalar_lea.vmem [#allocation0], 2
    %v51 = vld [vmem:[%s50] ss:$8 sm:$0xf]
    %s52 = scalar_lea.vmem [#allocation0], 2
    %v53 = vld [vmem:[%s52] ss:$8 sm:$0xf0]
    %vm54 = vcmask 1047556
    %v55 = vsel %vm54, %v53, %v51
    %56 = vrot.lane.b32.xlu0 %v55, 32
    %v57 = vpop.permute.xlu0 %56
    %vm58 = vcmask 392448
    %59 = vst.msk [vmem:[%s1] sm:$0xff] %vm58, %v57
    %s60 = scalar_lea.vmem [#allocation0], 1
    %v61 = vld [vmem:[%s60] ss:$8 sm:$0xf]
    %s62 = scalar_lea.vmem [#allocation0], 1
    %v63 = vld [vmem:[%s62] ss:$8 sm:$0xf0]
    %vm64 = vcmask 1047556
    %v65 = vsel %vm64, %v63, %v61
    %66 = vrot.lane.b32.xlu0 %v65, 16
    %v67 = vpop.permute.xlu0 %66
    %vm68 = vcmask 261248
    %69 = vst.msk [vmem:[%s1] sm:$0xff] %vm68, %v67

// kernel: gptj_forward.1
$region0: #{gptj_forward.1}
  #allocation0 [shape = 'u32[]', space=smem, size = 0x4, offset = 0x4, fixed_abs, tag = 'smem constant byte address 0x4 - core index']
  #allocation1 [shape = 'u32[72,128]{1,0:T(1,128)}', space=vmem, size = 0x9000, scoped, tag = 'internal scratch']
  #allocation2 [shape = 'f32[8,64]{1,0:T(8,128)}', space=vmem, size = 0x1000, scoped, tag = 'scratch operand']
  %s0 = inlined_call_operand.vmem [shape: f32[8,64], index: 0, kind: input, shape index: {}]
  %s1 = inlined_call_operand.vmem [shape: f32[8,64], index: 1, kind: input, shape index: {}]
  %s2 = inlined_call_operand.vmem [shape: f32[8,64], index: 2, kind: input, shape index: {}]
  %s3 = inlined_call_operand.vmem [shape: f32[64,64], index: 3, kind: input, shape index: {}]
  %s4 = inlined_call_operand.vmem [shape: f32[2,1,64], index: 4, kind: input, shape index: {}]
  %s5 = inlined_call_operand.vmem [shape: f32[2,1,64], index: 5, kind: input, shape index: {}]
  %s6 = inlined_call_operand.vmem [shape: f32[2,64,64], index: 6, kind: input, shape index: {}]
  %s7 = inlined_call_operand.vmem [shape: f32[2,64,64], index: 7, kind: input, shape index: {}]
  %s8 = inlined_call_operand.vmem [shape: f32[2,64,64], index: 8, kind: input, shape index: {}]
  %s9 = inlined_call_operand.vmem [shape: f32[2,64,64], index: 9, kind: input, shape index: {}]
  %s10 = inlined_call_operand.vmem [shape: f32[2,64,256], index: 10, kind: input, shape index: {}]
  %s11 = inlined_call_operand.vmem [shape: f32[2,1,256], index: 11, kind: input, shape index: {}]
  %s12 = inlined_call_operand.vmem [shape: f32[2,256,64], index: 12, kind: input, shape index: {}]
  %s13 = inlined_call_operand.vmem [shape: f32[2,1,64], index: 13, kind: input, shape index: {}]
  %s14 = inlined_call_operand.vmem [shape: f32[1,64], index: 14, kind: input, shape index: {}]
  %s15 = inlined_call_operand.vmem [shape: f32[1,64], index: 15, kind: input, shape index: {}]
  %s16 = inlined_call_operand.vmem [shape: f32[64,128], index: 16, kind: input, shape index: {}]
  %s17 = inlined_call_operand.vmem [shape: f32[1,128], index: 17, kind: input, shape index: {}]
  %s18 = inlined_call_operand.hbm [shape: f32[8,64], index: 18, kind: output, shape index: {0}]
  %s19 = inlined_call_operand.hbm [shape: f32[8,128], index: 19, kind: output, shape index: {1}]
  %20 = xla_tuple %s18, %s19
  %s21 = sld [smem:[#allocation0]]
  $region121: #{gptj_forward.1} parent=0
    _
  %s23 = ssub.s32 1, %s21
  %s24 = scalar_select 0, %s23, %s21
  $region1: #{gptj_forward.1} parent=0
    #allocation3 [shape = 'u8[4096]{0}', space=vmem, size = 0x1000, scoped, tag = 'output window, operand 0, single buffered']
    #allocation4 [shape = 's32[2]{0}', space=sflag, size = 0x8, scoped, tag = 'scoped memory for gptj_forward.1']
    #allocation5 [shape = 'u8[4096]{0}', space=vmem, size = 0x1000, scoped, tag = 'output window, operand 1, single buffered']
    #allocation6 [shape = 's32[1]{0}', space=sflag, size = 0x4, scoped, tag = 'scoped memory for gptj_forward.1']
    %25 = vsyncpa [#allocation4], 0
    %26 = vsyncpa [#allocation6], 0
    loop: start=0, step=1, limit=4
    $region2: #{gptj_forward.1} parent=1 // loop_pre_header
      _
    $region3: #{gptj_forward.1} parent=1 // loop_header
      %s28 = sphi 0, %s32
      %p29 = scmp.ge.s32.totalorder %s28, 4
      %s36 = sphi 0, %s36
      %s38 = sphi 0, %s36
      %s39 = sphi 0, %s38
      %s53 = sphi 0, %s39
      %s57 = sphi 0, %s57
      %s59 = sphi 0, %s57
      %s60 = sphi 0, %s59
      %s74 = sphi 0, %s60
      %s78 = sphi 0, %s78
      %s80 = sphi 0, %s78
      %s81 = sphi 0, %s80
      %s95 = sphi 0, %s81
      %s99 = sphi 0, %s99
      %s101 = sphi 0, %s99
      %s102 = sphi 0, %s101
      %s116 = sphi 0, %s102
      %s122 = sphi 0, %s124
      %s125 = sphi 0, %s122
      %s126 = sphi 0, %s125
      %s142 = sphi 0, %s126
      %s148 = sphi 0, %s150
      %s151 = sphi 0, %s148
      %s152 = sphi 0, %s151
      %s168 = sphi 0, %s152
      %s174 = sphi 0, %s176
      %s177 = sphi 0, %s174
      %s178 = sphi 0, %s177
      %s194 = sphi 0, %s178
      %s200 = sphi 0, %s202
      %s203 = sphi 0, %s200
      %s204 = sphi 0, %s203
      %s220 = sphi 0, %s204
      %s226 = sphi 0, %s228
      %s229 = sphi 0, %s226
      %s230 = sphi 0, %s229
      %s246 = sphi 0, %s230
      %s252 = sphi 0, %s254
      %s255 = sphi 0, %s252
      %s256 = sphi 0, %s255
      %s272 = sphi 0, %s256
      %s278 = sphi 0, %s280
      %s281 = sphi 0, %s278
      %s282 = sphi 0, %s281
      %s298 = sphi 0, %s282
      %s304 = sphi 0, %s306
      %s307 = sphi 0, %s304
      %s308 = sphi 0, %s307
      %s324 = sphi 0, %s308
      %s330 = sphi 0, %s332
      %s333 = sphi 0, %s330
      %s334 = sphi 0, %s333
      %s350 = sphi 0, %s334
      %s356 = sphi 0, %s358
      %s359 = sphi 0, %s356
      %s360 = sphi 0, %s359
      %s376 = sphi 0, %s360
      %s380 = sphi 0, %s380
      %s382 = sphi 0, %s380
      %s383 = sphi 0, %s382
      %s397 = sphi 0, %s383
      %s401 = sphi 0, %s401
      %s403 = sphi 0, %s401
      %s404 = sphi 0, %s403
      %s418 = sphi 0, %s404
      %s422 = sphi 0, %s422
      %s424 = sphi 0, %s422
      %s425 = sphi 0, %s424
      %s439 = sphi 0, %s425
      %s443 = sphi 0, %s443
      %s445 = sphi 0, %s443
      %s446 = sphi 0, %s445
      %s460 = sphi 0, %s446
      %s464 = sphi 0, %s464
      %s466 = sphi 0, %s464
      %s467 = sphi 0, %s466
      %s481 = sphi 0, %s467
      %s485 = sphi 0, %s485
      %s487 = sphi 0, %s485
      %s488 = sphi 0, %s487
      %s502 = sphi 0, %s488
    $region4: #{gptj_forward.1} parent=1 // loop_header_branch
      %31 = sbr.rel (%p29) target = $region8
    $region5: #{gptj_forward.1} parent=1 // loop_body
      %s33 = ssub.s32 %s28, 1
      %s34 = ssub.s32 %s28, 2
      %s35 = sadd.s32 %s28, 1
      %s37 = sadd.s32 %s36, 1
      %p40 = scmp.eq.s32.totalorder %s28, 1
      %p41 = scmp.ne.s32.totalorder %s36, %s38
      %p42 = scmp.eq.s32.totalorder %s28, 0
      %p43 = por %p41, %p42
      %p44 = scmp.ne.s32.totalorder %s36, %s38
      %p45 = scmp.eq.s32.totalorder %s33, 1
      %p46 = por %p44, %p45
      %p47 = scmp.ne.s32.totalorder %s38, %s39
      %p48 = scmp.eq.s32.totalorder %s33, 0
      %p49 = por %p47, %p48
      %p50 = scmp.ne.s32.totalorder %s38, %s39
      %p51 = scmp.eq.s32.totalorder %s34, 1
      %p52 = por %p50, %p51
      %p54 = scmp.ne.s32.totalorder %s39, %s53
      %p55 = scmp.eq.s32.totalorder %s34, 0
      %p56 = por %p54, %p55
      %s58 = sadd.s32 %s57, 1
      %p61 = scmp.eq.s32.totalorder %s28, 1
      %p62 = scmp.ne.s32.totalorder %s57, %s59
      %p63 = scmp.eq.s32.totalorder %s28, 0
      %p64 = por %p62, %p63
      %p65 = scmp.ne.s32.totalorder %s57, %s59
      %p66 = scmp.eq.s32.totalorder %s33, 1
      %p67 = por %p65, %p66
      %p68 = scmp.ne.s32.totalorder %s59, %s60
      %p69 = scmp.eq.s32.totalorder %s33, 0
      %p70 = por %p68, %p69
      %p71 = scmp.ne.s32.totalorder %s59, %s60
      %p72 = scmp.eq.s32.totalorder %s34, 1
      %p73 = por %p71, %p72
      %p75 = scmp.ne.s32.totalorder %s60, %s74
      %p76 = scmp.eq.s32.totalorder %s34, 0
      %p77 = por %p75, %p76
      %s79 = sadd.s32 %s78, 1
      %p82 = scmp.eq.s32.totalorder %s28, 1
      %p83 = scmp.ne.s32.totalorder %s78, %s80
      %p84 = scmp.eq.s32.totalorder %s28, 0
      %p85 = por %p83, %p84
      %p86 = scmp.ne.s32.totalorder %s78, %s80
      %p87 = scmp.eq.s32.totalorder %s33, 1
      %p88 = por %p86, %p87
      %p89 = scmp.ne.s32.totalorder %s80, %s81
      %p90 = scmp.eq.s32.totalorder %s33, 0
      %p91 = por %p89, %p90
      %p92 = scmp.ne.s32.totalorder %s80, %s81
      %p93 = scmp.eq.s32.totalorder %s34, 1
      %p94 = por %p92, %p93
      %p96 = scmp.ne.s32.totalorder %s81, %s95
      %p97 = scmp.eq.s32.totalorder %s34, 0
      %p98 = por %p96, %p97
      %s100 = sadd.s32 %s99, 1
      %p103 = scmp.eq.s32.totalorder %s28, 1
      %p104 = scmp.ne.s32.totalorder %s99, %s101
      %p105 = scmp.eq.s32.totalorder %s28, 0
      %p106 = por %p104, %p105
      %p107 = scmp.ne.s32.totalorder %s99, %s101
      %p108 = scmp.eq.s32.totalorder %s33, 1
      %p109 = por %p107, %p108
      %p110 = scmp.ne.s32.totalorder %s101, %s102
      %p111 = scmp.eq.s32.totalorder %s33, 0
      %p112 = por %p110, %p111
      %p113 = scmp.ne.s32.totalorder %s101, %s102
      %p114 = scmp.eq.s32.totalorder %s34, 1
      %p115 = por %p113, %p114
      %p117 = scmp.ne.s32.totalorder %s102, %s116
      %p118 = scmp.eq.s32.totalorder %s34, 0
      %p119 = por %p117, %p118
      %s120 = ssub.s32 %s28, %s35
      %p121 = scmp.eq.s32.totalorder %s120, 0
      %s123 = sadd.s32 %s122, 1
      %s124 = scalar_select %p121, %s122, %s123
      %p127 = pneg %p121
      %p128 = scmp.eq.s32.totalorder %s28, 1
      %p129 = por %p127, %p128
      %p130 = scmp.ne.s32.totalorder %s122, %s125
      %p131 = scmp.eq.s32.totalorder %s28, 0
      %p132 = por %p130, %p131
      %p133 = scmp.ne.s32.totalorder %s122, %s125
      %p134 = scmp.eq.s32.totalorder %s33, 1
      %p135 = por %p133, %p134
      %p136 = scmp.ne.s32.totalorder %s125, %s126
      %p137 = scmp.eq.s32.totalorder %s33, 0
      %p138 = por %p136, %p137
      %p139 = scmp.ne.s32.totalorder %s125, %s126
      %p140 = scmp.eq.s32.totalorder %s34, 1
      %p141 = por %p139, %p140
      %p143 = scmp.ne.s32.totalorder %s126, %s142
      %p144 = scmp.eq.s32.totalorder %s34, 0
      %p145 = por %p143, %p144
      %s146 = ssub.s32 %s28, %s35
      %p147 = scmp.eq.s32.totalorder %s146, 0
      %s149 = sadd.s32 %s148, 1
      %s150 = scalar_select %p147, %s148, %s149
      %p153 = pneg %p147
      %p154 = scmp.eq.s32.totalorder %s28, 1
      %p155 = por %p153, %p154
      %p156 = scmp.ne.s32.totalorder %s148, %s151
      %p157 = scmp.eq.s32.totalorder %s28, 0
      %p158 = por %p156, %p157
      %p159 = scmp.ne.s32.totalorder %s148, %s151
      %p160 = scmp.eq.s32.totalorder %s33, 1
      %p161 = por %p159, %p160
      %p162 = scmp.ne.s32.totalorder %s151, %s152
      %p163 = scmp.eq.s32.totalorder %s33, 0
      %p164 = por %p162, %p163
      %p165 = scmp.ne.s32.totalorder %s151, %s152
      %p166 = scmp.eq.s32.totalorder %s34, 1
      %p167 = por %p165, %p166
      %p169 = scmp.ne.s32.totalorder %s152, %s168
      %p170 = scmp.eq.s32.totalorder %s34, 0
      %p171 = por %p169, %p170
      %s172 = ssub.s32 %s28, %s35
      %p173 = scmp.eq.s32.totalorder %s172, 0
      %s175 = sadd.s32 %s174, 1
      %s176 = scalar_select %p173, %s174, %s175
      %p179 = pneg %p173
      %p180 = scmp.eq.s32.totalorder %s28, 1
      %p181 = por %p179, %p180
      %p182 = scmp.ne.s32.totalorder %s174, %s177
      %p183 = scmp.eq.s32.totalorder %s28, 0
      %p184 = por %p182, %p183
      %p185 = scmp.ne.s32.totalorder %s174, %s177
      %p186 = scmp.eq.s32.totalorder %s33, 1
      %p187 = por %p185, %p186
      %p188 = scmp.ne.s32.totalorder %s177, %s178
      %p189 = scmp.eq.s32.totalorder %s33, 0
      %p190 = por %p188, %p189
      %p191 = scmp.ne.s32.totalorder %s177, %s178
      %p192 = scmp.eq.s32.totalorder %s34, 1
      %p193 = por %p191, %p192
      %p195 = scmp.ne.s32.totalorder %s178, %s194
      %p196 = scmp.eq.s32.totalorder %s34, 0
      %p197 = por %p195, %p196
      %s198 = ssub.s32 %s28, %s35
      %p199 = scmp.eq.s32.totalorder %s198, 0
      %s201 = sadd.s32 %s200, 1
      %s202 = scalar_select %p199, %s200, %s201
      %p205 = pneg %p199
      %p206 = scmp.eq.s32.totalorder %s28, 1
      %p207 = por %p205, %p206
      %p208 = scmp.ne.s32.totalorder %s200, %s203
      %p209 = scmp.eq.s32.totalorder %s28, 0
      %p210 = por %p208, %p209
      %p211 = scmp.ne.s32.totalorder %s200, %s203
      %p212 = scmp.eq.s32.totalorder %s33, 1
      %p213 = por %p211, %p212
      %p214 = scmp.ne.s32.totalorder %s203, %s204
      %p215 = scmp.eq.s32.totalorder %s33, 0
      %p216 = por %p214, %p215
      %p217 = scmp.ne.s32.totalorder %s203, %s204
      %p218 = scmp.eq.s32.totalorder %s34, 1
      %p219 = por %p217, %p218
      %p221 = scmp.ne.s32.totalorder %s204, %s220
      %p222 = scmp.eq.s32.totalorder %s34, 0
      %p223 = por %p221, %p222
      %s224 = ssub.s32 %s28, %s35
      %p225 = scmp.eq.s32.totalorder %s224, 0
      %s227 = sadd.s32 %s226, 1
      %s228 = scalar_select %p225, %s226, %s227
      %p231 = pneg %p225
      %p232 = scmp.eq.s32.totalorder %s28, 1
      %p233 = por %p231, %p232
      %p234 = scmp.ne.s32.totalorder %s226, %s229
      %p235 = scmp.eq.s32.totalorder %s28, 0
      %p236 = por %p234, %p235
      %p237 = scmp.ne.s32.totalorder %s226, %s229
      %p238 = scmp.eq.s32.totalorder %s33, 1
      %p239 = por %p237, %p238
      %p240 = scmp.ne.s32.totalorder %s229, %s230
      %p241 = scmp.eq.s32.totalorder %s33, 0
      %p242 = por %p240, %p241
      %p243 = scmp.ne.s32.totalorder %s229, %s230
      %p244 = scmp.eq.s32.totalorder %s34, 1
      %p245 = por %p243, %p244
      %p247 = scmp.ne.s32.totalorder %s230, %s246
      %p248 = scmp.eq.s32.totalorder %s34, 0
      %p249 = por %p247, %p248
      %s250 = ssub.s32 %s28, %s35
      %p251 = scmp.eq.s32.totalorder %s250, 0
      %s253 = sadd.s32 %s252, 1
      %s254 = scalar_select %p251, %s252, %s253
      %p257 = pneg %p251
      %p258 = scmp.eq.s32.totalorder %s28, 1
      %p259 = por %p257, %p258
      %p260 = scmp.ne.s32.totalorder %s252, %s255
      %p261 = scmp.eq.s32.totalorder %s28, 0
      %p262 = por %p260, %p261
      %p263 = scmp.ne.s32.totalorder %s252, %s255
      %p264 = scmp.eq.s32.totalorder %s33, 1
      %p265 = por %p263, %p264
      %p266 = scmp.ne.s32.totalorder %s255, %s256
      %p267 = scmp.eq.s32.totalorder %s33, 0
      %p268 = por %p266, %p267
      %p269 = scmp.ne.s32.totalorder %s255, %s256
      %p270 = scmp.eq.s32.totalorder %s34, 1
      %p271 = por %p269, %p270
      %p273 = scmp.ne.s32.totalorder %s256, %s272
      %p274 = scmp.eq.s32.totalorder %s34, 0
      %p275 = por %p273, %p274
      %s276 = ssub.s32 %s28, %s35
      %p277 = scmp.eq.s32.totalorder %s276, 0
      %s279 = sadd.s32 %s278, 1
      %s280 = scalar_select %p277, %s278, %s279
      %p283 = pneg %p277
      %p284 = scmp.eq.s32.totalorder %s28, 1
      %p285 = por %p283, %p284
      %p286 = scmp.ne.s32.totalorder %s278, %s281
      %p287 = scmp.eq.s32.totalorder %s28, 0
      %p288 = por %p286, %p287
      %p289 = scmp.ne.s32.totalorder %s278, %s281
      %p290 = scmp.eq.s32.totalorder %s33, 1
      %p291 = por %p289, %p290
      %p292 = scmp.ne.s32.totalorder %s281, %s282
      %p293 = scmp.eq.s32.totalorder %s33, 0
      %p294 = por %p292, %p293
      %p295 = scmp.ne.s32.totalorder %s281, %s282
      %p296 = scmp.eq.s32.totalorder %s34, 1
      %p297 = por %p295, %p296
      %p299 = scmp.ne.s32.totalorder %s282, %s298
      %p300 = scmp.eq.s32.totalorder %s34, 0
      %p301 = por %p299, %p300
      %s302 = ssub.s32 %s28, %s35
      %p303 = scmp.eq.s32.totalorder %s302, 0
      %s305 = sadd.s32 %s304, 1
      %s306 = scalar_select %p303, %s304, %s305
      %p309 = pneg %p303
      %p310 = scmp.eq.s32.totalorder %s28, 1
      %p311 = por %p309, %p310
      %p312 = scmp.ne.s32.totalorder %s304, %s307
      %p313 = scmp.eq.s32.totalorder %s28, 0
      %p314 = por %p312, %p313
      %p315 = scmp.ne.s32.totalorder %s304, %s307
      %p316 = scmp.eq.s32.totalorder %s33, 1
      %p317 = por %p315, %p316
      %p318 = scmp.ne.s32.totalorder %s307, %s308
      %p319 = scmp.eq.s32.totalorder %s33, 0
      %p320 = por %p318, %p319
      %p321 = scmp.ne.s32.totalorder %s307, %s308
      %p322 = scmp.eq.s32.totalorder %s34, 1
      %p323 = por %p321, %p322
      %p325 = scmp.ne.s32.totalorder %s308, %s324
      %p326 = scmp.eq.s32.totalorder %s34, 0
      %p327 = por %p325, %p326
      %s328 = ssub.s32 %s28, %s35
      %p329 = scmp.eq.s32.totalorder %s328, 0
      %s331 = sadd.s32 %s330, 1
      %s332 = scalar_select %p329, %s330, %s331
      %p335 = pneg %p329
      %p336 = scmp.eq.s32.totalorder %s28, 1
      %p337 = por %p335, %p336
      %p338 = scmp.ne.s32.totalorder %s330, %s333
      %p339 = scmp.eq.s32.totalorder %s28, 0
      %p340 = por %p338, %p339
      %p341 = scmp.ne.s32.totalorder %s330, %s333
      %p342 = scmp.eq.s32.totalorder %s33, 1
      %p343 = por %p341, %p342
      %p344 = scmp.ne.s32.totalorder %s333, %s334
      %p345 = scmp.eq.s32.totalorder %s33, 0
      %p346 = por %p344, %p345
      %p347 = scmp.ne.s32.totalorder %s333, %s334
      %p348 = scmp.eq.s32.totalorder %s34, 1
      %p349 = por %p347, %p348
      %p351 = scmp.ne.s32.totalorder %s334, %s350
      %p352 = scmp.eq.s32.totalorder %s34, 0
      %p353 = por %p351, %p352
      %s354 = ssub.s32 %s28, %s35
      %p355 = scmp.eq.s32.totalorder %s354, 0
      %s357 = sadd.s32 %s356, 1
      %s358 = scalar_select %p355, %s356, %s357
      %p361 = pneg %p355
      %p362 = scmp.eq.s32.totalorder %s28, 1
      %p363 = por %p361, %p362
      %p364 = scmp.ne.s32.totalorder %s356, %s359
      %p365 = scmp.eq.s32.totalorder %s28, 0
      %p366 = por %p364, %p365
      %p367 = scmp.ne.s32.totalorder %s356, %s359
      %p368 = scmp.eq.s32.totalorder %s33, 1
      %p369 = por %p367, %p368
      %p370 = scmp.ne.s32.totalorder %s359, %s360
      %p371 = scmp.eq.s32.totalorder %s33, 0
      %p372 = por %p370, %p371
      %p373 = scmp.ne.s32.totalorder %s359, %s360
      %p374 = scmp.eq.s32.totalorder %s34, 1
      %p375 = por %p373, %p374
      %p377 = scmp.ne.s32.totalorder %s360, %s376
      %p378 = scmp.eq.s32.totalorder %s34, 0
      %p379 = por %p377, %p378
      %s381 = sadd.s32 %s380, 1
      %p384 = scmp.eq.s32.totalorder %s28, 1
      %p385 = scmp.ne.s32.totalorder %s380, %s382
      %p386 = scmp.eq.s32.totalorder %s28, 0
      %p387 = por %p385, %p386
      %p388 = scmp.ne.s32.totalorder %s380, %s382
      %p389 = scmp.eq.s32.totalorder %s33, 1
      %p390 = por %p388, %p389
      %p391 = scmp.ne.s32.totalorder %s382, %s383
      %p392 = scmp.eq.s32.totalorder %s33, 0
      %p393 = por %p391, %p392
      %p394 = scmp.ne.s32.totalorder %s382, %s383
      %p395 = scmp.eq.s32.totalorder %s34, 1
      %p396 = por %p394, %p395
      %p398 = scmp.ne.s32.totalorder %s383, %s397
      %p399 = scmp.eq.s32.totalorder %s34, 0
      %p400 = por %p398, %p399
      %s402 = sadd.s32 %s401, 1
      %p405 = scmp.eq.s32.totalorder %s28, 1
      %p406 = scmp.ne.s32.totalorder %s401, %s403
      %p407 = scmp.eq.s32.totalorder %s28, 0
      %p408 = por %p406, %p407
      %p409 = scmp.ne.s32.totalorder %s401, %s403
      %p410 = scmp.eq.s32.totalorder %s33, 1
      %p411 = por %p409, %p410
      %p412 = scmp.ne.s32.totalorder %s403, %s404
      %p413 = scmp.eq.s32.totalorder %s33, 0
      %p414 = por %p412, %p413
      %p415 = scmp.ne.s32.totalorder %s403, %s404
      %p416 = scmp.eq.s32.totalorder %s34, 1
      %p417 = por %p415, %p416
      %p419 = scmp.ne.s32.totalorder %s404, %s418
      %p420 = scmp.eq.s32.totalorder %s34, 0
      %p421 = por %p419, %p420
      %s423 = sadd.s32 %s422, 1
      %p426 = scmp.eq.s32.totalorder %s28, 1
      %p427 = scmp.ne.s32.totalorder %s422, %s424
      %p428 = scmp.eq.s32.totalorder %s28, 0
      %p429 = por %p427, %p428
      %p430 = scmp.ne.s32.totalorder %s422, %s424
      %p431 = scmp.eq.s32.totalorder %s33, 1
      %p432 = por %p430, %p431
      %p433 = scmp.ne.s32.totalorder %s424, %s425
      %p434 = scmp.eq.s32.totalorder %s33, 0
      %p435 = por %p433, %p434
      %p436 = scmp.ne.s32.totalorder %s424, %s425
      %p437 = scmp.eq.s32.totalorder %s34, 1
      %p438 = por %p436, %p437
      %p440 = scmp.ne.s32.totalorder %s425, %s439
      %p441 = scmp.eq.s32.totalorder %s34, 0
      %p442 = por %p440, %p441
      %s444 = sadd.s32 %s443, 1
      %p447 = scmp.eq.s32.totalorder %s28, 1
      %p448 = scmp.ne.s32.totalorder %s443, %s445
      %p449 = scmp.eq.s32.totalorder %s28, 0
      %p450 = por %p448, %p449
      %p451 = scmp.ne.s32.totalorder %s443, %s445
      %p452 = scmp.eq.s32.totalorder %s33, 1
      %p453 = por %p451, %p452
      %p454 = scmp.ne.s32.totalorder %s445, %s446
      %p455 = scmp.eq.s32.totalorder %s33, 0
      %p456 = por %p454, %p455
      %p457 = scmp.ne.s32.totalorder %s445, %s446
      %p458 = scmp.eq.s32.totalorder %s34, 1
      %p459 = por %p457, %p458
      %p461 = scmp.ne.s32.totalorder %s446, %s460
      %p462 = scmp.eq.s32.totalorder %s34, 0
      %p463 = por %p461, %p462
      %s465 = sadd.s32 %s464, 1
      %p468 = scmp.eq.s32.totalorder %s28, 1
      %p469 = scmp.ne.s32.totalorder %s464, %s466
      %p470 = scmp.eq.s32.totalorder %s28, 0
      %p471 = por %p469, %p470
      %p472 = scmp.ne.s32.totalorder %s464, %s466
      %p473 = scmp.eq.s32.totalorder %s33, 1
      %p474 = por %p472, %p473
      %p475 = scmp.ne.s32.totalorder %s466, %s467
      %p476 = scmp.eq.s32.totalorder %s33, 0
      %p477 = por %p475, %p476
      %p478 = scmp.ne.s32.totalorder %s466, %s467
      %p479 = scmp.eq.s32.totalorder %s34, 1
      %p480 = por %p478, %p479
      %p482 = scmp.ne.s32.totalorder %s467, %s481
      %p483 = scmp.eq.s32.totalorder %s34, 0
      %p484 = por %p482, %p483
      %s486 = sadd.s32 %s485, 1
      %p489 = scmp.eq.s32.totalorder %s28, 1
      %p490 = scmp.ne.s32.totalorder %s485, %s487
      %p491 = scmp.eq.s32.totalorder %s28, 0
      %p492 = por %p490, %p491
      %p493 = scmp.ne.s32.totalorder %s485, %s487
      %p494 = scmp.eq.s32.totalorder %s33, 1
      %p495 = por %p493, %p494
      %p496 = scmp.ne.s32.totalorder %s487, %s488
      %p497 = scmp.eq.s32.totalorder %s33, 0
      %p498 = por %p496, %p497
      %p499 = scmp.ne.s32.totalorder %s487, %s488
      %p500 = scmp.eq.s32.totalorder %s34, 1
      %p501 = por %p499, %p500
      %p503 = scmp.ne.s32.totalorder %s488, %s502
      %p504 = scmp.eq.s32.totalorder %s34, 0
      %p505 = por %p503, %p504
      %p506 = scmp.le.s32.totalorder 1, %s28
      %p507 = scmp.lt.s32.totalorder %s28, 3
      %p508 = pnand %p506, %p507
      %p509 = pneg %p508
      // Predicated region
      $region9: #{gptj_forward.1} parent=5 // pred_check
        _
      $region10: #{gptj_forward.1} parent=5 // pred_check_branch
        %511 = sbr.rel (%p508) target = $region12
      $region11: #{gptj_forward.1} parent=5 // pred_region
        %s512 = ssub.s32 %s28, 1
        // Predicated region
        $region13: #{gptj_forward.1} parent=11 // pred_check
          %p513 = pneg %p49
        $region14: #{gptj_forward.1} parent=11 // pred_check_branch
          %515 = sbr.rel (%p513) target = $region16
        $region15: #{gptj_forward.1} parent=11 // pred_region
          _
        $region16: #{gptj_forward.1} parent=11 // pred_fallthru
          _
        // Predicated region
        $region17: #{gptj_forward.1} parent=11 // pred_check
          %p516 = pneg %p70
        $region18: #{gptj_forward.1} parent=11 // pred_check_branch
          %518 = sbr.rel (%p516) target = $region20
        $region19: #{gptj_forward.1} parent=11 // pred_region
          _
        $region20: #{gptj_forward.1} parent=11 // pred_fallthru
          _
        // Predicated region
        $region21: #{gptj_forward.1} parent=11 // pred_check
          %p519 = pneg %p91
        $region22: #{gptj_forward.1} parent=11 // pred_check_branch
          %521 = sbr.rel (%p519) target = $region24
        $region23: #{gptj_forward.1} parent=11 // pred_region
          _
        $region24: #{gptj_forward.1} parent=11 // pred_fallthru
          _
        // Predicated region
        $region25: #{gptj_forward.1} parent=11 // pred_check
          %p522 = pneg %p112
        $region26: #{gptj_forward.1} parent=11 // pred_check_branch
          %524 = sbr.rel (%p522) target = $region28
        $region27: #{gptj_forward.1} parent=11 // pred_region
          _
        $region28: #{gptj_forward.1} parent=11 // pred_fallthru
          _
        // Predicated region
        $region29: #{gptj_forward.1} parent=11 // pred_check
          %p525 = pneg %p393
        $region30: #{gptj_forward.1} parent=11 // pred_check_branch
          %527 = sbr.rel (%p525) target = $region32
        $region31: #{gptj_forward.1} parent=11 // pred_region
          _
        $region32: #{gptj_forward.1} parent=11 // pred_fallthru
          _
        // Predicated region
        $region33: #{gptj_forward.1} parent=11 // pred_check
          %p528 = pneg %p414
        $region34: #{gptj_forward.1} parent=11 // pred_check_branch
          %530 = sbr.rel (%p528) target = $region36
        $region35: #{gptj_forward.1} parent=11 // pred_region
          _
        $region36: #{gptj_forward.1} parent=11 // pred_fallthru
          _
        // Predicated region
        $region37: #{gptj_forward.1} parent=11 // pred_check
          %p531 = pneg %p435
        $region38: #{gptj_forward.1} parent=11 // pred_check_branch
          %533 = sbr.rel (%p531) target = $region40
        $region39: #{gptj_forward.1} parent=11 // pred_region
          _
        $region40: #{gptj_forward.1} parent=11 // pred_fallthru
          _
        // Predicated region
        $region41: #{gptj_forward.1} parent=11 // pred_check
          %p534 = pneg %p456
        $region42: #{gptj_forward.1} parent=11 // pred_check_branch
          %536 = sbr.rel (%p534) target = $region44
        $region43: #{gptj_forward.1} parent=11 // pred_region
          _
        $region44: #{gptj_forward.1} parent=11 // pred_fallthru
          _
      $region12: #{gptj_forward.1} parent=5 // pred_fallthru
        _
      %p537 = scmp.lt.s32.totalorder %s28, 2
      // Predicated region
      $region45: #{gptj_forward.1} parent=5 // pred_check
        %p538 = pneg %p537
      $region46: #{gptj_forward.1} parent=5 // pred_check_branch
        %540 = sbr.rel (%p538) target = $region48
      $region47: #{gptj_forward.1} parent=5 // pred_region
        // Predicated region
        $region49: #{gptj_forward.1} parent=47 // pred_check
          %p541 = pneg %p132
        $region50: #{gptj_forward.1} parent=47 // pred_check_branch
          %543 = sbr.rel (%p541) target = $region52
        $region51: #{gptj_forward.1} parent=47 // pred_region
          %p544 = scmp.lt.s32.totalorder %s28, 1
          %s545 = scalar_select %p544, %s28, 1
          %s546 = scalar_lea.vmem %s4, %s545
        $region52: #{gptj_forward.1} parent=47 // pred_fallthru
          _
        // Predicated region
        $region53: #{gptj_forward.1} parent=47 // pred_check
          %p547 = pneg %p158
        $region54: #{gptj_forward.1} parent=47 // pred_check_branch
          %549 = sbr.rel (%p547) target = $region56
        $region55: #{gptj_forward.1} parent=47 // pred_region
          %p550 = scmp.lt.s32.totalorder %s28, 1
          %s551 = scalar_select %p550, %s28, 1
          %s552 = scalar_lea.vmem %s5, %s551
        $region56: #{gptj_forward.1} parent=47 // pred_fallthru
          _
        // Predicated region
        $region57: #{gptj_forward.1} parent=47 // pred_check
          %p553 = pneg %p184
        $region58: #{gptj_forward.1} parent=47 // pred_check_branch
          %555 = sbr.rel (%p553) target = $region60
        $region59: #{gptj_forward.1} parent=47 // pred_region
          %p556 = scmp.lt.s32.totalorder %s28, 1
          %s557 = scalar_select %p556, %s28, 1
          %s558 = smul.addr %s557, 8
          %s559 = smul.addr %s558, 8
          %s560 = scalar_lea.vmem %s6, %s559
        $region60: #{gptj_forward.1} parent=47 // pred_fallthru
          _
        // Predicated region
        $region61: #{gptj_forward.1} parent=47 // pred_check
          %p561 = pneg %p210
        $region62: #{gptj_forward.1} parent=47 // pred_check_branch
          %563 = sbr.rel (%p561) target = $region64
        $region63: #{gptj_forward.1} parent=47 // pred_region
          %p564 = scmp.lt.s32.totalorder %s28, 1
          %s565 = scalar_select %p564, %s28, 1
          %s566 = smul.addr %s565, 8
          %s567 = smul.addr %s566, 8
          %s568 = scalar_lea.vmem %s7, %s567
        $region64: #{gptj_forward.1} parent=47 // pred_fallthru
          _
        // Predicated region
        $region65: #{gptj_forward.1} parent=47 // pred_check
          %p569 = pneg %p236
        $region66: #{gptj_forward.1} parent=47 // pred_check_branch
          %571 = sbr.rel (%p569) target = $region68
        $region67: #{gptj_forward.1} parent=47 // pred_region
          %p572 = scmp.lt.s32.totalorder %s28, 1
          %s573 = scalar_select %p572, %s28, 1
          %s574 = smul.addr %s573, 8
          %s575 = smul.addr %s574, 8
          %s576 = scalar_lea.vmem %s8, %s575
        $region68: #{gptj_forward.1} parent=47 // pred_fallthru
          _
        // Predicated region
        $region69: #{gptj_forward.1} parent=47 // pred_check
          %p577 = pneg %p262
        $region70: #{gptj_forward.1} parent=47 // pred_check_branch
          %579 = sbr.rel (%p577) target = $region72
        $region71: #{gptj_forward.1} parent=47 // pred_region
          %p580 = scmp.lt.s32.totalorder %s28, 1
          %s581 = scalar_select %p580, %s28, 1
          %s582 = smul.addr %s581, 8
          %s583 = smul.addr %s582, 8
          %s584 = scalar_lea.vmem %s9, %s583
        $region72: #{gptj_forward.1} parent=47 // pred_fallthru
          _
        // Predicated region
        $region73: #{gptj_forward.1} parent=47 // pred_check
          %p585 = pneg %p288
        $region74: #{gptj_forward.1} parent=47 // pred_check_branch
          %587 = sbr.rel (%p585) target = $region76
        $region75: #{gptj_forward.1} parent=47 // pred_region
          %p588 = scmp.lt.s32.totalorder %s28, 1
          %s589 = scalar_select %p588, %s28, 1
          %s590 = smul.addr %s589, 16
          %s591 = smul.addr %s590, 8
          %s592 = scalar_lea.vmem %s10, %s591
        $region76: #{gptj_forward.1} parent=47 // pred_fallthru
          _
        // Predicated region
        $region77: #{gptj_forward.1} parent=47 // pred_check
          %p593 = pneg %p314
        $region78: #{gptj_forward.1} parent=47 // pred_check_branch
          %595 = sbr.rel (%p593) target = $region80
        $region79: #{gptj_forward.1} parent=47 // pred_region
          %p596 = scmp.lt.s32.totalorder %s28, 1
          %s597 = scalar_select %p596, %s28, 1
          %s598 = smul.addr %s597, 2
          %s599 = scalar_lea.vmem %s11, %s598
        $region80: #{gptj_forward.1} parent=47 // pred_fallthru
          _
        // Predicated region
        $region81: #{gptj_forward.1} parent=47 // pred_check
          %p600 = pneg %p340
        $region82: #{gptj_forward.1} parent=47 // pred_check_branch
          %602 = sbr.rel (%p600) target = $region84
        $region83: #{gptj_forward.1} parent=47 // pred_region
          %p603 = scmp.lt.s32.totalorder %s28, 1
          %s604 = scalar_select %p603, %s28, 1
          %s605 = smul.addr %s604, 32
          %s606 = smul.addr %s605, 8
          %s607 = scalar_lea.vmem %s12, %s606
        $region84: #{gptj_forward.1} parent=47 // pred_fallthru
          _
        // Predicated region
        $region85: #{gptj_forward.1} parent=47 // pred_check
          %p608 = pneg %p366
        $region86: #{gptj_forward.1} parent=47 // pred_check_branch
          %610 = sbr.rel (%p608) target = $region88
        $region87: #{gptj_forward.1} parent=47 // pred_region
          %p611 = scmp.lt.s32.totalorder %s28, 1
          %s612 = scalar_select %p611, %s28, 1
          %s613 = scalar_lea.vmem %s13, %s612
        $region88: #{gptj_forward.1} parent=47 // pred_fallthru
          _
      $region48: #{gptj_forward.1} parent=5 // pred_fallthru
        _
      %p614 = scmp.le.s32.totalorder 1, %s28
      %p615 = scmp.lt.s32.totalorder %s28, 3
      %p616 = pnand %p614, %p615
      %p617 = pneg %p616
      // Predicated region
      $region89: #{gptj_forward.1} parent=5 // pred_check
        _
      $region90: #{gptj_forward.1} parent=5 // pred_check_branch
        %619 = sbr.rel (%p616) target = $region92
      $region91: #{gptj_forward.1} parent=5 // pred_region
        %s620 = ssub.s32 %s28, 1
        %p621 = pneg %p49
        %p622 = pneg %p46
        %p623 = pneg %p70
        %p624 = pneg %p67
        %p625 = pneg %p91
        %p626 = pneg %p88
        %p627 = pneg %p112
        %p628 = pneg %p109
        %p629 = scmp.lt.s32.totalorder %s33, 1
        %s630 = scalar_select %p629, %s33, 1
        %s631 = scalar_lea.vmem %s4, %s630
        %p632 = pneg %p138
        %p633 = pneg %p135
        %p634 = scmp.lt.s32.totalorder %s33, 1
        %s635 = scalar_select %p634, %s33, 1
        %s636 = scalar_lea.vmem %s5, %s635
        %p637 = pneg %p164
        %p638 = pneg %p161
        %p639 = scmp.lt.s32.totalorder %s33, 1
        %s640 = scalar_select %p639, %s33, 1
        %s641 = smul.addr %s640, 8
        %s642 = smul.addr %s641, 8
        %s643 = scalar_lea.vmem %s6, %s642
        %p644 = pneg %p190
        %p645 = pneg %p187
        %p646 = scmp.lt.s32.totalorder %s33, 1
        %s647 = scalar_select %p646, %s33, 1
        %s648 = smul.addr %s647, 8
        %s649 = smul.addr %s648, 8
        %s650 = scalar_lea.vmem %s7, %s649
        %p651 = pneg %p216
        %p652 = pneg %p213
        %p653 = scmp.lt.s32.totalorder %s33, 1
        %s654 = scalar_select %p653, %s33, 1
        %s655 = smul.addr %s654, 8
        %s656 = smul.addr %s655, 8
        %s657 = scalar_lea.vmem %s8, %s656
        %p658 = pneg %p242
        %p659 = pneg %p239
        %p660 = scmp.lt.s32.totalorder %s33, 1
        %s661 = scalar_select %p660, %s33, 1
        %s662 = smul.addr %s661, 8
        %s663 = smul.addr %s662, 8
        %s664 = scalar_lea.vmem %s9, %s663
        %p665 = pneg %p268
        %p666 = pneg %p265
        %p667 = scmp.lt.s32.totalorder %s33, 1
        %s668 = scalar_select %p667, %s33, 1
        %s669 = smul.addr %s668, 16
        %s670 = smul.addr %s669, 8
        %s671 = scalar_lea.vmem %s10, %s670
        %p672 = pneg %p294
        %p673 = pneg %p291
        %p674 = scmp.lt.s32.totalorder %s33, 1
        %s675 = scalar_select %p674, %s33, 1
        %s676 = smul.addr %s675, 2
        %s677 = scalar_lea.vmem %s11, %s676
        %p678 = pneg %p320
        %p679 = pneg %p317
        %p680 = scmp.lt.s32.totalorder %s33, 1
        %s681 = scalar_select %p680, %s33, 1
        %s682 = smul.addr %s681, 32
        %s683 = smul.addr %s682, 8
        %s684 = scalar_lea.vmem %s12, %s683
        %p685 = pneg %p346
        %p686 = pneg %p343
        %p687 = scmp.lt.s32.totalorder %s33, 1
        %s688 = scalar_select %p687, %s33, 1
        %s689 = scalar_lea.vmem %s13, %s688
        %p690 = pneg %p372
        %p691 = pneg %p369
        %p692 = pneg %p393
        %p693 = pneg %p390
        %p694 = pneg %p414
        %p695 = pneg %p411
        %p696 = pneg %p435
        %p697 = pneg %p432
        %p698 = pneg %p456
        %p699 = pneg %p453
        %p700 = pneg %p477
        %p701 = pneg %p474
        %p702 = pneg %p498
        %p703 = pneg %p495
        %p704 = scmp.lt.s32.totalorder %s33, 1
        %s705 = scalar_select %p704, %s33, 1
        %s706 = scalar_lea.vmem %s4, %s705
        %p707 = scmp.lt.s32.totalorder %s33, 1
        %s708 = scalar_select %p707, %s33, 1
        %s709 = scalar_lea.vmem %s5, %s708
        %p710 = scmp.lt.s32.totalorder %s33, 1
        %s711 = scalar_select %p710, %s33, 1
        %s712 = smul.addr %s711, 8
        %s713 = smul.addr %s712, 8
        %s714 = scalar_lea.vmem %s6, %s713
        %p715 = scmp.lt.s32.totalorder %s33, 1
        %s716 = scalar_select %p715, %s33, 1
        %s717 = smul.addr %s716, 8
        %s718 = smul.addr %s717, 8
        %s719 = scalar_lea.vmem %s7, %s718
        %p720 = scmp.lt.s32.totalorder %s33, 1
        %s721 = scalar_select %p720, %s33, 1
        %s722 = smul.addr %s721, 8
        %s723 = smul.addr %s722, 8
        %s724 = scalar_lea.vmem %s8, %s723
        %p725 = scmp.lt.s32.totalorder %s33, 1
        %s726 = scalar_select %p725, %s33, 1
        %s727 = smul.addr %s726, 8
        %s728 = smul.addr %s727, 8
        %s729 = scalar_lea.vmem %s9, %s728
        %p730 = scmp.lt.s32.totalorder %s33, 1
        %s731 = scalar_select %p730, %s33, 1
        %s732 = smul.addr %s731, 16
        %s733 = smul.addr %s732, 8
        %s734 = scalar_lea.vmem %s10, %s733
        %p735 = scmp.lt.s32.totalorder %s33, 1
        %s736 = scalar_select %p735, %s33, 1
        %s737 = smul.addr %s736, 2
        %s738 = scalar_lea.vmem %s11, %s737
        %p739 = scmp.lt.s32.totalorder %s33, 1
        %s740 = scalar_select %p739, %s33, 1
        %s741 = smul.addr %s740, 32
        %s742 = smul.addr %s741, 8
        %s743 = scalar_lea.vmem %s12, %s742
        %p744 = scmp.lt.s32.totalorder %s33, 1
        %s745 = scalar_select %p744, %s33, 1
        %s746 = scalar_lea.vmem %s13, %s745
        %p747 = scmp.eq.s32.totalorder %s33, 0
        // Predicated region
        $region93: #{gptj_forward.1} parent=91 // pred_check
          %p748 = pneg %p747
        $region94: #{gptj_forward.1} parent=91 // pred_check_branch
          %750 = sbr.rel (%p748) target = $region96
        $region95: #{gptj_forward.1} parent=91 // pred_region
          %v751 = vld [vmem:[%s0] sm:$0xff]
          %vm752 = vcmask 523264
          %753 = vst.msk [vmem:[#allocation2] sm:$0xff] %vm752, %v751
        $region96: #{gptj_forward.1} parent=91 // pred_fallthru
          _
        %v754 = vld [vmem:[#allocation2] sm:$0xff]
        %v755 = vld [vmem:[%s706] sm:$0x1]
        %v756 = vld [vmem:[%s709] sm:$0x1]
        %vm757 = vcmask 523264
        %v758 = vsel %vm757, %v754, 0.0
        %759 = vadd.xlane.f32.xlu0 %v758
        %v760 = vpop.xlane.xlu0 %759
        %v761 = vrcp.pop 64.0
        %v762 = vmul.f32 64.0, %v761
        %v763 = vsub.f32 1.0, %v762
        %v764 = vmul.f32 %v761, %v763
        %v765 = vadd.f32 %v761, %v764
        %vm766 = vweird.f32 %v761
        %v767 = vsel %vm766, %v761, %v765
        %v768 = vmul.f32 %v760, %v767
        %v769 = vsub.f32 %v754, %v768
        %v770 = vmul.f32 %v769, %v769
        %v771 = vsel %vm757, %v770, 0.0
        %772 = vadd.xlane.f32.xlu0 %v771
        %v773 = vpop.xlane.xlu0 %772
        %v774 = vmul.f32 %v773, %v767
        %v775 = vadd.f32 %v774, 1e-05
        %v776 = vrsqrt.pop %v775
        %v777 = vmul.f32 %v776, %v775
        %v778 = vmul.f32 %v777, %v776
        %v779 = vmul.f32 0.5, %v778
        %v780 = vsub.f32 1.5, %v779
        %v781 = vmul.f32 %v776, %v780
        %vm782 = vweird.f32 %v775
        %vm783 = vweird.f32 %v776
        %vm784 = vmor %vm782, %vm783
        %v785 = vsel %vm784, %v776, %v781
        %v786 = vmul.f32 %v769, %v785
        %v788 = vperm.slane %v755, 0
        %v790 = vmul.f32 %v786, %v788
        %v792 = vperm.slane %v756, 0
        %v794 = vadd.f32 %v790, %v792
        %v795 = vld [vmem:[%s714] sm:$0xff]
        %v796 = vld [vmem:[%s714 + $0x8] sm:$0xff]
        %v797 = vld [vmem:[%s714 + $0x10] sm:$0xff]
        %v798 = vld [vmem:[%s714 + $0x18] sm:$0xff]
        %v799 = vld [vmem:[%s714 + $0x20] sm:$0xff]
        %v800 = vld [vmem:[%s714 + $0x28] sm:$0xff]
        %v801 = vld [vmem:[%s714 + $0x30] sm:$0xff]
        %v802 = vld [vmem:[%s714 + $0x38] sm:$0xff]
        %v804 = vsel %vm757, %v794, 0
        %806 = vmatpush.msra.mxu0 0.0
        %807 = vmatpush.msra.mxu0 0.0
        %808 = vmatpush.msra.mxu0 0.0
        %809 = vmatpush.msra.mxu0 0.0
        %810 = vmatpush.msra.mxu0 0.0
        %811 = vmatpush.msra.mxu0 0.0
        %812 = vmatpush.msra.mxu0 0.0
        %813 = vmatpush.msra.mxu0 0.0
        %814 = vmatpush.msra.mxu0 %v802
        %815 = vmatpush.msra.mxu0 %v801
        %816 = vmatpush.msra.mxu0 %v800
        %817 = vmatpush.msra.mxu0 %v799
        %818 = vmatpush.msra.mxu0 %v798
        %819 = vmatpush.msra.mxu0 %v797
        %820 = vmatpush.msra.mxu0 %v796
        %821 = vmatpush.msra.mxu0 %v795
        %822 = vmatmul.f32.gmra.mxu0 %v804
        %v823 = vpop.f32.mrf.mxu0
        %v824 = vadd.f32 0.0, %v823
        %825 = vdwg.mxu0
        %v826 = vld [vmem:[%s719] sm:$0xff]
        %v827 = vld [vmem:[%s719 + $0x8] sm:$0xff]
        %v828 = vld [vmem:[%s719 + $0x10] sm:$0xff]
        %v829 = vld [vmem:[%s719 + $0x18] sm:$0xff]
        %v830 = vld [vmem:[%s719 + $0x20] sm:$0xff]
        %v831 = vld [vmem:[%s719 + $0x28] sm:$0xff]
        %v832 = vld [vmem:[%s719 + $0x30] sm:$0xff]
        %v833 = vld [vmem:[%s719 + $0x38] sm:$0xff]
        %834 = vmatpush.msra.mxu0 0.0
        %835 = vmatpush.msra.mxu0 0.0
        %836 = vmatpush.msra.mxu0 0.0
        %837 = vmatpush.msra.mxu0 0.0
        %838 = vmatpush.msra.mxu0 0.0
        %839 = vmatpush.msra.mxu0 0.0
        %840 = vmatpush.msra.mxu0 0.0
        %841 = vmatpush.msra.mxu0 0.0
        %842 = vmatpush.msra.mxu0 %v833
        %843 = vmatpush.msra.mxu0 %v832
        %844 = vmatpush.msra.mxu0 %v831
        %845 = vmatpush.msra.mxu0 %v830
        %846 = vmatpush.msra.mxu0 %v829
        %847 = vmatpush.msra.mxu0 %v828
        %848 = vmatpush.msra.mxu0 %v827
        %849 = vmatpush.msra.mxu0 %v826
        %850 = vmatmul.f32.gmra.mxu0 %v804
        %v851 = vpop.f32.mrf.mxu0
        %v852 = vadd.f32 0.0, %v851
        %853 = vdwg.mxu0
        %v854 = vld [vmem:[%s724] sm:$0xff]
        %v855 = vld [vmem:[%s724 + $0x8] sm:$0xff]
        %v856 = vld [vmem:[%s724 + $0x10] sm:$0xff]
        %v857 = vld [vmem:[%s724 + $0x18] sm:$0xff]
        %v858 = vld [vmem:[%s724 + $0x20] sm:$0xff]
        %v859 = vld [vmem:[%s724 + $0x28] sm:$0xff]
        %v860 = vld [vmem:[%s724 + $0x30] sm:$0xff]
        %v861 = vld [vmem:[%s724 + $0x38] sm:$0xff]
        %862 = vmatpush.msra.mxu0 0.0
        %863 = vmatpush.msra.mxu0 0.0
        %864 = vmatpush.msra.mxu0 0.0
        %865 = vmatpush.msra.mxu0 0.0
        %866 = vmatpush.msra.mxu0 0.0
        %867 = vmatpush.msra.mxu0 0.0
        %868 = vmatpush.msra.mxu0 0.0
        %869 = vmatpush.msra.mxu0 0.0
        %870 = vmatpush.msra.mxu0 %v861
        %871 = vmatpush.msra.mxu0 %v860
        %872 = vmatpush.msra.mxu0 %v859
        %873 = vmatpush.msra.mxu0 %v858
        %874 = vmatpush.msra.mxu0 %v857
        %875 = vmatpush.msra.mxu0 %v856
        %876 = vmatpush.msra.mxu0 %v855
        %877 = vmatpush.msra.mxu0 %v854
        %878 = vmatmul.f32.gmra.mxu0 %v804
        %v879 = vpop.f32.mrf.mxu0
        %v880 = vadd.f32 0.0, %v879
        %881 = vdwg.mxu0
        %v882 = vld [vmem:[%s1] sm:$0xff]
        %v883 = vld [vmem:[%s2] sm:$0xff]
        %v884 = vld [vmem:[%s3] sm:$0xff]
        %v885 = vld [vmem:[%s3 + $0x8] sm:$0xff]
        %v886 = vld [vmem:[%s3 + $0x10] sm:$0xff]
        %v887 = vld [vmem:[%s3 + $0x18] sm:$0xff]
        %v888 = vld [vmem:[%s3 + $0x20] sm:$0xff]
        %v889 = vld [vmem:[%s3 + $0x28] sm:$0xff]
        %v890 = vld [vmem:[%s3 + $0x30] sm:$0xff]
        %v891 = vld [vmem:[%s3 + $0x38] sm:$0xff]
        %v892 = vmul.f32 %v824, %v882
        %v894 = vsel %vm757, %v824, 0
        %896 = vmatpush.msra.mxu0 0.0
        %897 = vmatpush.msra.mxu0 0.0
        %898 = vmatpush.msra.mxu0 0.0
        %899 = vmatpush.msra.mxu0 0.0
        %900 = vmatpush.msra.mxu0 0.0
        %901 = vmatpush.msra.mxu0 0.0
        %902 = vmatpush.msra.mxu0 0.0
        %903 = vmatpush.msra.mxu0 0.0
        %904 = vmatpush.msra.mxu0 %v891
        %905 = vmatpush.msra.mxu0 %v890
        %906 = vmatpush.msra.mxu0 %v889
        %907 = vmatpush.msra.mxu0 %v888
        %908 = vmatpush.msra.mxu0 %v887
        %909 = vmatpush.msra.mxu0 %v886
        %910 = vmatpush.msra.mxu0 %v885
        %911 = vmatpush.msra.mxu0 %v884
        %912 = vmatmul.f32.gmra.mxu0 %v894
        %v913 = vpop.f32.mrf.mxu0
        %v914 = vadd.f32 0.0, %v913
        %915 = vdwg.mxu0
        %v916 = vmul.f32 %v914, %v883
        %v917 = vadd.f32 %v892, %v916
        %v918 = vmul.f32 %v852, %v882
        %v920 = vsel %vm757, %v852, 0
        %922 = vmatpush.msra.mxu0 0.0
        %923 = vmatpush.msra.mxu0 0.0
        %924 = vmatpush.msra.mxu0 0.0
        %925 = vmatpush.msra.mxu0 0.0
        %926 = vmatpush.msra.mxu0 0.0
        %927 = vmatpush.msra.mxu0 0.0
        %928 = vmatpush.msra.mxu0 0.0
        %929 = vmatpush.msra.mxu0 0.0
        %930 = vmatpush.msra.mxu0 %v891
        %931 = vmatpush.msra.mxu0 %v890
        %932 = vmatpush.msra.mxu0 %v889
        %933 = vmatpush.msra.mxu0 %v888
        %934 = vmatpush.msra.mxu0 %v887
        %935 = vmatpush.msra.mxu0 %v886
        %936 = vmatpush.msra.mxu0 %v885
        %937 = vmatpush.msra.mxu0 %v884
        %938 = vmatmul.f32.gmra.mxu0 %v920
        %v939 = vpop.f32.mrf.mxu0
        %v940 = vadd.f32 0.0, %v939
        %941 = vdwg.mxu0
        %v942 = vmul.f32 %v940, %v883
        %v943 = vadd.f32 %v918, %v942
        %v944 = vlaneseq
        %v945 = vshrl.u32 %v944, 7
        %v946 = vlaneseq
        %v947 = vand.u32 %v946, 127
        %vm948 = vcmp.le.s32.totalorder %v947, %v945
        %vm949 = vcmask 130048
        %v951 = vsel %vm949, %v917, 0
        %v954 = vsel %vm949, %v943, 0
        %956 = vmatpush.xpose.msra.mxu0 0.0
        %957 = vmatpush.xpose.msra.mxu0 0.0
        %958 = vmatpush.xpose.msra.mxu0 0.0
        %959 = vmatpush.xpose.msra.mxu0 0.0
        %960 = vmatpush.xpose.msra.mxu0 0.0
        %961 = vmatpush.xpose.msra.mxu0 0.0
        %962 = vmatpush.xpose.msra.mxu0 0.0
        %963 = vmatpush.xpose.msra.mxu0 0.0
        %964 = vmatpush.xpose.msra.mxu0 0.0
        %965 = vmatpush.xpose.msra.mxu0 0.0
        %966 = vmatpush.xpose.msra.mxu0 0.0
        %967 = vmatpush.xpose.msra.mxu0 0.0
        %968 = vmatpush.xpose.msra.mxu0 0.0
        %969 = vmatpush.xpose.msra.mxu0 0.0
        %970 = vmatpush.xpose.msra.mxu0 0.0
        %971 = vmatpush.xpose.msra.mxu0 %v954
        %972 = vmatmul.f32.gmra.mxu0 %v951
        %v973 = vpop.f32.mrf.mxu0
        %v974 = vadd.f32 0.0, %v973
        %975 = vdwg.mxu0
        %v976 = vmul.f32 %v974, 0.25
        %v977 = vsel %vm948, %v976, -1e+30
        %vm978 = vcmask 64512
        %v979 = vsel %vm978, %v977, -inf
        %980 = vmax.xlane.f32.xlu0 %v979
        %v981 = vpop.xlane.xlu0 %980
        %v982 = vsub.f32 %v977, %v981
        %v983 = vmul.f32 %v982, 1.442695
        %v984 = vpow.pop %v983
        %v985 = vsel %vm978, %v984, 0.0
        %986 = vadd.xlane.f32.xlu0 %v985
        %v987 = vpop.xlane.xlu0 %986
        %v988 = vrcp.pop %v987
        %v989 = vmul.f32 %v984, %v988
        %v991 = vsel %vm978, %v989, 0
        %993 = vmatpush.msra.mxu0 0.0
        %994 = vmatpush.msra.mxu0 0.0
        %995 = vmatpush.msra.mxu0 0.0
        %996 = vmatpush.msra.mxu0 0.0
        %997 = vmatpush.msra.mxu0 0.0
        %998 = vmatpush.msra.mxu0 0.0
        %999 = vmatpush.msra.mxu0 0.0
        %1000 = vmatpush.msra.mxu0 0.0
        %1001 = vmatpush.msra.mxu0 0.0
        %1002 = vmatpush.msra.mxu0 0.0
        %1003 = vmatpush.msra.mxu0 0.0
        %1004 = vmatpush.msra.mxu0 0.0
        %1005 = vmatpush.msra.mxu0 0.0
        %1006 = vmatpush.msra.mxu0 0.0
        %1007 = vmatpush.msra.mxu0 0.0
        %1008 = vmatpush.msra.mxu0 %v880
        %1009 = vmatmul.f32.gmra.mxu0 %v991
        %v1010 = vpop.f32.mrf.mxu0
        %v1011 = vadd.f32 0.0, %v1010
        %1012 = vdwg.mxu0
        %1013 = vrot.lane.b32.xlu0 %v917, 112
        %v1014 = vpop.permute.xlu0 %1013
        %1015 = vrot.lane.b32.xlu0 %v943, 112
        %v1016 = vpop.permute.xlu0 %1015
        %v1017 = vsel %vm949, %v1014, 0
        %v1019 = vsel %vm949, %v1016, 0
        %1021 = vmatpush.xpose.msra.mxu0 0.0
        %1022 = vmatpush.xpose.msra.mxu0 0.0
        %1023 = vmatpush.xpose.msra.mxu0 0.0
        %1024 = vmatpush.xpose.msra.mxu0 0.0
        %1025 = vmatpush.xpose.msra.mxu0 0.0
        %1026 = vmatpush.xpose.msra.mxu0 0.0
        %1027 = vmatpush.xpose.msra.mxu0 0.0
        %1028 = vmatpush.xpose.msra.mxu0 0.0
        %1029 = vmatpush.xpose.msra.mxu0 0.0
        %1030 = vmatpush.xpose.msra.mxu0 0.0
        %1031 = vmatpush.xpose.msra.mxu0 0.0
        %1032 = vmatpush.xpose.msra.mxu0 0.0
        %1033 = vmatpush.xpose.msra.mxu0 0.0
        %1034 = vmatpush.xpose.msra.mxu0 0.0
        %1035 = vmatpush.xpose.msra.mxu0 0.0
        %1036 = vmatpush.xpose.msra.mxu0 %v1019
        %1037 = vmatmul.f32.gmra.mxu0 %v1017
        %v1038 = vpop.f32.mrf.mxu0
        %v1039 = vadd.f32 0.0, %v1038
        %1040 = vdwg.mxu0
        %v1041 = vmul.f32 %v1039, 0.25
        %v1042 = vsel %vm948, %v1041, -1e+30
        %v1043 = vsel %vm978, %v1042, -inf
        %1044 = vmax.xlane.f32.xlu0 %v1043
        %v1045 = vpop.xlane.xlu0 %1044
        %v1046 = vsub.f32 %v1042, %v1045
        %v1047 = vmul.f32 %v1046, 1.442695
        %v1048 = vpow.pop %v1047
        %v1049 = vsel %vm978, %v1048, 0.0
        %1050 = vadd.xlane.f32.xlu0 %v1049
        %v1051 = vpop.xlane.xlu0 %1050
        %v1052 = vrcp.pop %v1051
        %v1053 = vmul.f32 %v1048, %v1052
        %1055 = vrot.lane.b32.xlu0 %v880, 112
        %v1056 = vpop.permute.xlu0 %1055
        %v1059 = vsel %vm978, %v1053, 0
        %1061 = vmatpush.msra.mxu0 0.0
        %1062 = vmatpush.msra.mxu0 0.0
        %1063 = vmatpush.msra.mxu0 0.0
        %1064 = vmatpush.msra.mxu0 0.0
        %1065 = vmatpush.msra.mxu0 0.0
        %1066 = vmatpush.msra.mxu0 0.0
        %1067 = vmatpush.msra.mxu0 0.0
        %1068 = vmatpush.msra.mxu0 0.0
        %1069 = vmatpush.msra.mxu0 0.0
        %1070 = vmatpush.msra.mxu0 0.0
        %1071 = vmatpush.msra.mxu0 0.0
        %1072 = vmatpush.msra.mxu0 0.0
        %1073 = vmatpush.msra.mxu0 0.0
        %1074 = vmatpush.msra.mxu0 0.0
        %1075 = vmatpush.msra.mxu0 0.0
        %1076 = vmatpush.msra.mxu0 %v1056
        %1077 = vmatmul.f32.gmra.mxu0 %v1059
        %v1078 = vpop.f32.mrf.mxu0
        %v1079 = vadd.f32 0.0, %v1078
        %1080 = vdwg.mxu0
        %1081 = vrot.lane.b32.xlu0 %v917, 96
        %v1082 = vpop.permute.xlu0 %1081
        %1083 = vrot.lane.b32.xlu0 %v943, 96
        %v1084 = vpop.permute.xlu0 %1083
        %v1085 = vsel %vm949, %v1082, 0
        %v1087 = vsel %vm949, %v1084, 0
        %1089 = vmatpush.xpose.msra.mxu0 0.0
        %1090 = vmatpush.xpose.msra.mxu0 0.0
        %1091 = vmatpush.xpose.msra.mxu0 0.0
        %1092 = vmatpush.xpose.msra.mxu0 0.0
        %1093 = vmatpush.xpose.msra.mxu0 0.0
        %1094 = vmatpush.xpose.msra.mxu0 0.0
        %1095 = vmatpush.xpose.msra.mxu0 0.0
        %1096 = vmatpush.xpose.msra.mxu0 0.0
        %1097 = vmatpush.xpose.msra.mxu0 0.0
        %1098 = vmatpush.xpose.msra.mxu0 0.0
        %1099 = vmatpush.xpose.msra.mxu0 0.0
        %1100 = vmatpush.xpose.msra.mxu0 0.0
        %1101 = vmatpush.xpose.msra.mxu0 0.0
        %1102 = vmatpush.xpose.msra.mxu0 0.0
        %1103 = vmatpush.xpose.msra.mxu0 0.0
        %1104 = vmatpush.xpose.msra.mxu0 %v1087
        %1105 = vmatmul.f32.gmra.mxu0 %v1085
        %v1106 = vpop.f32.mrf.mxu0
        %v1107 = vadd.f32 0.0, %v1106
        %1108 = vdwg.mxu0
        %v1109 = vmul.f32 %v1107, 0.25
        %v1110 = vsel %vm948, %v1109, -1e+30
        %v1111 = vsel %vm978, %v1110, -inf
        %1112 = vmax.xlane.f32.xlu0 %v1111
        %v1113 = vpop.xlane.xlu0 %1112
        %v1114 = vsub.f32 %v1110, %v1113
        %v1115 = vmul.f32 %v1114, 1.442695
        %v1116 = vpow.pop %v1115
        %v1117 = vsel %vm978, %v1116, 0.0
        %1118 = vadd.xlane.f32.xlu0 %v1117
        %v1119 = vpop.xlane.xlu0 %1118
        %v1120 = vrcp.pop %v1119
        %v1121 = vmul.f32 %v1116, %v1120
        %1122 = vrot.lane.b32.xlu0 %v880, 96
        %v1123 = vpop.permute.xlu0 %1122
        %v1126 = vsel %vm978, %v1121, 0
        %1128 = vmatpush.msra.mxu0 0.0
        %1129 = vmatpush.msra.mxu0 0.0
        %1130 = vmatpush.msra.mxu0 0.0
        %1131 = vmatpush.msra.mxu0 0.0
        %1132 = vmatpush.msra.mxu0 0.0
        %1133 = vmatpush.msra.mxu0 0.0
        %1134 = vmatpush.msra.mxu0 0.0
        %1135 = vmatpush.msra.mxu0 0.0
        %1136 = vmatpush.msra.mxu0 0.0
        %1137 = vmatpush.msra.mxu0 0.0
        %1138 = vmatpush.msra.mxu0 0.0
        %1139 = vmatpush.msra.mxu0 0.0
        %1140 = vmatpush.msra.mxu0 0.0
        %1141 = vmatpush.msra.mxu0 0.0
        %1142 = vmatpush.msra.mxu0 0.0
        %1143 = vmatpush.msra.mxu0 %v1123
        %1144 = vmatmul.f32.gmra.mxu0 %v1126
        %v1145 = vpop.f32.mrf.mxu0
        %v1146 = vadd.f32 0.0, %v1145
        %1147 = vdwg.mxu0
        %1148 = vrot.lane.b32.xlu0 %v917, 80
        %v1149 = vpop.permute.xlu0 %1148
        %1150 = vrot.lane.b32.xlu0 %v943, 80
        %v1151 = vpop.permute.xlu0 %1150
        %v1152 = vsel %vm949, %v1149, 0
        %v1154 = vsel %vm949, %v1151, 0
        %1156 = vmatpush.xpose.msra.mxu0 0.0
        %1157 = vmatpush.xpose.msra.mxu0 0.0
        %1158 = vmatpush.xpose.msra.mxu0 0.0
        %1159 = vmatpush.xpose.msra.mxu0 0.0
        %1160 = vmatpush.xpose.msra.mxu0 0.0
        %1161 = vmatpush.xpose.msra.mxu0 0.0
        %1162 = vmatpush.xpose.msra.mxu0 0.0
        %1163 = vmatpush.xpose.msra.mxu0 0.0
        %1164 = vmatpush.xpose.msra.mxu0 0.0
        %1165 = vmatpush.xpose.msra.mxu0 0.0
        %1166 = vmatpush.xpose.msra.mxu0 0.0
        %1167 = vmatpush.xpose.msra.mxu0 0.0
        %1168 = vmatpush.xpose.msra.mxu0 0.0
        %1169 = vmatpush.xpose.msra.mxu0 0.0
        %1170 = vmatpush.xpose.msra.mxu0 0.0
        %1171 = vmatpush.xpose.msra.mxu0 %v1154
        %1172 = vmatmul.f32.gmra.mxu0 %v1152
        %v1173 = vpop.f32.mrf.mxu0
        %v1174 = vadd.f32 0.0, %v1173
        %1175 = vdwg.mxu0
        %v1176 = vmul.f32 %v1174, 0.25
        %v1177 = vsel %vm948, %v1176, -1e+30
        %v1178 = vsel %vm978, %v1177, -inf
        %1179 = vmax.xlane.f32.xlu0 %v1178
        %v1180 = vpop.xlane.xlu0 %1179
        %v1181 = vsub.f32 %v1177, %v1180
        %v1182 = vmul.f32 %v1181, 1.442695
        %v1183 = vpow.pop %v1182
        %v1184 = vsel %vm978, %v1183, 0.0
        %1185 = vadd.xlane.f32.xlu0 %v1184
        %v1186 = vpop.xlane.xlu0 %1185
        %v1187 = vrcp.pop %v1186
        %v1188 = vmul.f32 %v1183, %v1187
        %1189 = vrot.lane.b32.xlu0 %v880, 80
        %v1190 = vpop.permute.xlu0 %1189
        %v1193 = vsel %vm978, %v1188, 0
        %1195 = vmatpush.msra.mxu0 0.0
        %1196 = vmatpush.msra.mxu0 0.0
        %1197 = vmatpush.msra.mxu0 0.0
        %1198 = vmatpush.msra.mxu0 0.0
        %1199 = vmatpush.msra.mxu0 0.0
        %1200 = vmatpush.msra.mxu0 0.0
        %1201 = vmatpush.msra.mxu0 0.0
        %1202 = vmatpush.msra.mxu0 0.0
        %1203 = vmatpush.msra.mxu0 0.0
        %1204 = vmatpush.msra.mxu0 0.0
        %1205 = vmatpush.msra.mxu0 0.0
        %1206 = vmatpush.msra.mxu0 0.0
        %1207 = vmatpush.msra.mxu0 0.0
        %1208 = vmatpush.msra.mxu0 0.0
        %1209 = vmatpush.msra.mxu0 0.0
        %1210 = vmatpush.msra.mxu0 %v1190
        %1211 = vmatmul.f32.gmra.mxu0 %v1193
        %v1212 = vpop.f32.mrf.mxu0
        %v1213 = vadd.f32 0.0, %v1212
        %1214 = vdwg.mxu0
        %1216 = vrot.lane.b32.xlu0 %v1079, 16
        %v1217 = vpop.permute.xlu0 %1216
        %1220 = vrot.lane.b32.xlu0 %v1146, 32
        %v1221 = vpop.permute.xlu0 %1220
        %1224 = vrot.lane.b32.xlu0 %v1213, 48
        %v1225 = vpop.permute.xlu0 %1224
        %v1227 = vsel %vm949, %v1011, %v1217
        %vm1228 = vcmask 261120
        %v1229 = vsel %vm1228, %v1227, %v1221
        %vm1230 = vcmask 392192
        %v1231 = vsel %vm1230, %v1229, %v1225
        %v1232 = vld [vmem:[%s729] sm:$0xff]
        %v1233 = vld [vmem:[%s729 + $0x8] sm:$0xff]
        %v1234 = vld [vmem:[%s729 + $0x10] sm:$0xff]
        %v1235 = vld [vmem:[%s729 + $0x18] sm:$0xff]
        %v1236 = vld [vmem:[%s729 + $0x20] sm:$0xff]
        %v1237 = vld [vmem:[%s729 + $0x28] sm:$0xff]
        %v1238 = vld [vmem:[%s729 + $0x30] sm:$0xff]
        %v1239 = vld [vmem:[%s729 + $0x38] sm:$0xff]
        %v1240 = vld [vmem:[%s734] sm:$0xff]
        %v1241 = vld [vmem:[%s734 + $0x8] sm:$0xff]
        %v1242 = vld [vmem:[%s734 + $0x10] sm:$0xff]
        %v1243 = vld [vmem:[%s734 + $0x18] sm:$0xff]
        %v1244 = vld [vmem:[%s734 + $0x20] sm:$0xff]
        %v1245 = vld [vmem:[%s734 + $0x28] sm:$0xff]
        %v1246 = vld [vmem:[%s734 + $0x30] sm:$0xff]
        %v1247 = vld [vmem:[%s734 + $0x38] sm:$0xff]
        %v1248 = vld [vmem:[%s734 + $0x40] sm:$0xff]
        %v1249 = vld [vmem:[%s734 + $0x48] sm:$0xff]
        %v1250 = vld [vmem:[%s734 + $0x50] sm:$0xff]
        %v1251 = vld [vmem:[%s734 + $0x58] sm:$0xff]
        %v1252 = vld [vmem:[%s734 + $0x60] sm:$0xff]
        %v1253 = vld [vmem:[%s734 + $0x68] sm:$0xff]
        %v1254 = vld [vmem:[%s734 + $0x70] sm:$0xff]
        %v1255 = vld [vmem:[%s734 + $0x78] sm:$0xff]
        %v1256 = vld [vmem:[%s738] sm:$0x3]
        %v1258 = vperm.slane %v1256, 0
        %v1259 = vperm.slane %v1256, 1
        %1262 = vmatpush.msra.mxu0 0.0
        %1263 = vmatpush.msra.mxu0 0.0
        %1264 = vmatpush.msra.mxu0 0.0
        %1265 = vmatpush.msra.mxu0 0.0
        %1266 = vmatpush.msra.mxu0 0.0
        %1267 = vmatpush.msra.mxu0 0.0
        %1268 = vmatpush.msra.mxu0 0.0
        %1269 = vmatpush.msra.mxu0 0.0
        %1270 = vmatpush.msra.mxu0 %v1254
        %1271 = vmatpush.msra.mxu0 %v1252
        %1272 = vmatpush.msra.mxu0 %v1250
        %1273 = vmatpush.msra.mxu0 %v1248
        %1274 = vmatpush.msra.mxu0 %v1246
        %1275 = vmatpush.msra.mxu0 %v1244
        %1276 = vmatpush.msra.mxu0 %v1242
        %1277 = vmatpush.msra.mxu0 %v1240
        %1278 = vmatmul.f32.gmra.mxu0 %v804
        %v1279 = vpop.f32.mrf.mxu0
        %v1280 = vadd.f32 %v1258, %v1279
        %1281 = vdwg.mxu0
        %1282 = vmatpush.msra.mxu0 0.0
        %1283 = vmatpush.msra.mxu0 0.0
        %1284 = vmatpush.msra.mxu0 0.0
        %1285 = vmatpush.msra.mxu0 0.0
        %1286 = vmatpush.msra.mxu0 0.0
        %1287 = vmatpush.msra.mxu0 0.0
        %1288 = vmatpush.msra.mxu0 0.0
        %1289 = vmatpush.msra.mxu0 0.0
        %1290 = vmatpush.msra.mxu0 %v1255
        %1291 = vmatpush.msra.mxu0 %v1253
        %1292 = vmatpush.msra.mxu0 %v1251
        %1293 = vmatpush.msra.mxu0 %v1249
        %1294 = vmatpush.msra.mxu0 %v1247
        %1295 = vmatpush.msra.mxu0 %v1245
        %1296 = vmatpush.msra.mxu0 %v1243
        %1297 = vmatpush.msra.mxu0 %v1241
        %1298 = vmatmul.f32.gmra.mxu0 %v804
        %v1299 = vpop.f32.mrf.mxu0
        %v1300 = vadd.f32 %v1259, %v1299
        %1301 = vdwg.mxu0
        %v1302 = vmul.f32 %v1280, 0.5
        %v1303 = vmul.f32 %v1300, 0.5
        %v1304 = vmul.f32 %v1280, 0.044715
        %v1305 = vmul.f32 %v1300, 0.044715
        %v1306 = vmul.f32 %v1304, %v1280
        %v1307 = vmul.f32 %v1305, %v1300
        %v1308 = vmul.f32 %v1306, %v1280
        %v1309 = vmul.f32 %v1307, %v1300
        %v1310 = vadd.f32 %v1280, %v1308
        %v1311 = vadd.f32 %v1300, %v1309
        %v1312 = vmul.f32 %v1310, 0.7978846
        %v1313 = vmul.f32 %v1311, 0.7978846
        %v1314 = vtanh.pop %v1312
        %v1315 = vtanh.pop %v1313
        %v1316 = vadd.f32 %v1314, 1.0
        %v1317 = vadd.f32 %v1315, 1.0
        %v1318 = vmul.f32 %v1302, %v1316
        %v1319 = vmul.f32 %v1303, %v1317
        %v1320 = vld [vmem:[%s743] sm:$0xff]
        %v1321 = vld [vmem:[%s743 + $0x8] sm:$0xff]
        %v1322 = vld [vmem:[%s743 + $0x10] sm:$0xff]
        %v1323 = vld [vmem:[%s743 + $0x18] sm:$0xff]
        %v1324 = vld [vmem:[%s743 + $0x20] sm:$0xff]
        %v1325 = vld [vmem:[%s743 + $0x28] sm:$0xff]
        %v1326 = vld [vmem:[%s743 + $0x30] sm:$0xff]
        %v1327 = vld [vmem:[%s743 + $0x38] sm:$0xff]
        %v1328 = vld [vmem:[%s743 + $0x40] sm:$0xff]
        %v1329 = vld [vmem:[%s743 + $0x48] sm:$0xff]
        %v1330 = vld [vmem:[%s743 + $0x50] sm:$0xff]
        %v1331 = vld [vmem:[%s743 + $0x58] sm:$0xff]
        %v1332 = vld [vmem:[%s743 + $0x60] sm:$0xff]
        %v1333 = vld [vmem:[%s743 + $0x68] sm:$0xff]
        %v1334 = vld [vmem:[%s743 + $0x70] sm:$0xff]
        %v1335 = vld [vmem:[%s743 + $0x78] sm:$0xff]
        %v1336 = vld [vmem:[%s743 + $0x80] sm:$0xff]
        %v1337 = vld [vmem:[%s743 + $0x88] sm:$0xff]
        %v1338 = vld [vmem:[%s743 + $0x90] sm:$0xff]
        %v1339 = vld [vmem:[%s743 + $0x98] sm:$0xff]
        %v1340 = vld [vmem:[%s743 + $0xa0] sm:$0xff]
        %v1341 = vld [vmem:[%s743 + $0xa8] sm:$0xff]
        %v1342 = vld [vmem:[%s743 + $0xb0] sm:$0xff]
        %v1343 = vld [vmem:[%s743 + $0xb8] sm:$0xff]
        %v1344 = vld [vmem:[%s743 + $0xc0] sm:$0xff]
        %v1345 = vld [vmem:[%s743 + $0xc8] sm:$0xff]
        %v1346 = vld [vmem:[%s743 + $0xd0] sm:$0xff]
        %v1347 = vld [vmem:[%s743 + $0xd8] sm:$0xff]
        %v1348 = vld [vmem:[%s743 + $0xe0] sm:$0xff]
        %v1349 = vld [vmem:[%s743 + $0xe8] sm:$0xff]
        %v1350 = vld [vmem:[%s743 + $0xf0] sm:$0xff]
        %v1351 = vld [vmem:[%s743 + $0xf8] sm:$0xff]
        %v1352 = vld [vmem:[%s746] sm:$0x1]
        %v1354 = vperm.slane %v1352, 0
        %1356 = vmatpush.msra.mxu0 %v1335
        %1357 = vmatpush.msra.mxu0 %v1334
        %1358 = vmatpush.msra.mxu0 %v1333
        %1359 = vmatpush.msra.mxu0 %v1332
        %1360 = vmatpush.msra.mxu0 %v1331
        %1361 = vmatpush.msra.mxu0 %v1330
        %1362 = vmatpush.msra.mxu0 %v1329
        %1363 = vmatpush.msra.mxu0 %v1328
        %1364 = vmatpush.msra.mxu0 %v1327
        %1365 = vmatpush.msra.mxu0 %v1326
        %1366 = vmatpush.msra.mxu0 %v1325
        %1367 = vmatpush.msra.mxu0 %v1324
        %1368 = vmatpush.msra.mxu0 %v1323
        %1369 = vmatpush.msra.mxu0 %v1322
        %1370 = vmatpush.msra.mxu0 %v1321
        %1371 = vmatpush.msra.mxu0 %v1320
        %1372 = vmatmul.f32.gmra.mxu0 %v1318
        %v1373 = vpop.f32.mrf.mxu0
        %v1374 = vadd.f32 %v1354, %v1373
        %1375 = vdwg.mxu0
        %1376 = vmatpush.msra.mxu0 %v1351
        %1377 = vmatpush.msra.mxu0 %v1350
        %1378 = vmatpush.msra.mxu0 %v1349
        %1379 = vmatpush.msra.mxu0 %v1348
        %1380 = vmatpush.msra.mxu0 %v1347
        %1381 = vmatpush.msra.mxu0 %v1346
        %1382 = vmatpush.msra.mxu0 %v1345
        %1383 = vmatpush.msra.mxu0 %v1344
        %1384 = vmatpush.msra.mxu0 %v1343
        %1385 = vmatpush.msra.mxu0 %v1342
        %1386 = vmatpush.msra.mxu0 %v1341
        %1387 = vmatpush.msra.mxu0 %v1340
        %1388 = vmatpush.msra.mxu0 %v1339
        %1389 = vmatpush.msra.mxu0 %v1338
        %1390 = vmatpush.msra.mxu0 %v1337
        %1391 = vmatpush.msra.mxu0 %v1336
        %1392 = vmatmul.f32.gmra.mxu0 %v1319
        %v1393 = vpop.f32.mrf.mxu0
        %v1394 = vadd.f32 %v1374, %v1393
        %1395 = vdwg.mxu0
        %v1397 = vsel %vm757, %v1231, 0
        %1399 = vmatpush.msra.mxu0 0.0
        %1400 = vmatpush.msra.mxu0 0.0
        %1401 = vmatpush.msra.mxu0 0.0
        %1402 = vmatpush.msra.mxu0 0.0
        %1403 = vmatpush.msra.mxu0 0.0
        %1404 = vmatpush.msra.mxu0 0.0
        %1405 = vmatpush.msra.mxu0 0.0
        %1406 = vmatpush.msra.mxu0 0.0
        %1407 = vmatpush.msra.mxu0 %v1239
        %1408 = vmatpush.msra.mxu0 %v1238
        %1409 = vmatpush.msra.mxu0 %v1237
        %1410 = vmatpush.msra.mxu0 %v1236
        %1411 = vmatpush.msra.mxu0 %v1235
        %1412 = vmatpush.msra.mxu0 %v1234
        %1413 = vmatpush.msra.mxu0 %v1233
        %1414 = vmatpush.msra.mxu0 %v1232
        %1415 = vmatmul.f32.gmra.mxu0 %v1397
        %v1416 = vpop.f32.mrf.mxu0
        %v1417 = vadd.f32 %v1394, %v1416
        %1418 = vdwg.mxu0
        %v1419 = vadd.f32 %v1417, %v754
        %1420 = vst.msk [vmem:[#allocation2] sm:$0xff] %vm757, %v1419
        %p1421 = scmp.eq.s32.totalorder %s33, 1
        // Predicated region
        $region97: #{gptj_forward.1} parent=91 // pred_check
          %p1422 = pneg %p1421
        $region98: #{gptj_forward.1} parent=91 // pred_check_branch
          %1424 = sbr.rel (%p1422) target = $region100
        $region99: #{gptj_forward.1} parent=91 // pred_region
          %v1425 = vld [vmem:[%s14] sm:$0x1]
          %v1426 = vld [vmem:[%s15] sm:$0x1]
          %v1427 = vsel %vm757, %v1419, 0.0
          %1428 = vadd.xlane.f32.xlu0 %v1427
          %v1429 = vpop.xlane.xlu0 %1428
          %v1430 = vmul.f32 %v1429, %v767
          %v1431 = vsub.f32 %v1419, %v1430
          %v1432 = vmul.f32 %v1431, %v1431
          %v1433 = vsel %vm757, %v1432, 0.0
          %1434 = vadd.xlane.f32.xlu0 %v1433
          %v1435 = vpop.xlane.xlu0 %1434
          %v1436 = vmul.f32 %v1435, %v767
          %v1437 = vadd.f32 %v1436, 1e-05
          %v1438 = vrsqrt.pop %v1437
          %v1439 = vmul.f32 %v1438, %v1437
          %v1440 = vmul.f32 %v1439, %v1438
          %v1441 = vmul.f32 0.5, %v1440
          %v1442 = vsub.f32 1.5, %v1441
          %v1443 = vmul.f32 %v1438, %v1442
          %vm1444 = vweird.f32 %v1437
          %vm1445 = vweird.f32 %v1438
          %vm1446 = vmor %vm1444, %vm1445
          %v1447 = vsel %vm1446, %v1438, %v1443
          %v1448 = vmul.f32 %v1431, %v1447
          %v1450 = vperm.slane %v1425, 0
          %v1452 = vmul.f32 %v1448, %v1450
          %v1454 = vperm.slane %v1426, 0
          %v1456 = vadd.f32 %v1452, %v1454
          %1457 = vst.msk [vmem:[#allocation3] sm:$0xff] %vm757, %v1456
          %v1458 = vld [vmem:[%s16] sm:$0xff]
          %v1459 = vld [vmem:[%s16 + $0x8] sm:$0xff]
          %v1460 = vld [vmem:[%s16 + $0x10] sm:$0xff]
          %v1461 = vld [vmem:[%s16 + $0x18] sm:$0xff]
          %v1462 = vld [vmem:[%s16 + $0x20] sm:$0xff]
          %v1463 = vld [vmem:[%s16 + $0x28] sm:$0xff]
          %v1464 = vld [vmem:[%s16 + $0x30] sm:$0xff]
          %v1465 = vld [vmem:[%s16 + $0x38] sm:$0xff]
          %v1466 = vld [vmem:[%s17] sm:$0x1]
          %v1468 = vperm.slane %v1466, 0
          %v1471 = vsel %vm757, %v1456, 0
          %1473 = vmatpush.msra.mxu0 0.0
          %1474 = vmatpush.msra.mxu0 0.0
          %1475 = vmatpush.msra.mxu0 0.0
          %1476 = vmatpush.msra.mxu0 0.0
          %1477 = vmatpush.msra.mxu0 0.0
          %1478 = vmatpush.msra.mxu0 0.0
          %1479 = vmatpush.msra.mxu0 0.0
          %1480 = vmatpush.msra.mxu0 0.0
          %1481 = vmatpush.msra.mxu0 %v1465
          %1482 = vmatpush.msra.mxu0 %v1464
          %1483 = vmatpush.msra.mxu0 %v1463
          %1484 = vmatpush.msra.mxu0 %v1462
          %1485 = vmatpush.msra.mxu0 %v1461
          %1486 = vmatpush.msra.mxu0 %v1460
          %1487 = vmatpush.msra.mxu0 %v1459
          %1488 = vmatpush.msra.mxu0 %v1458
          %1489 = vmatmul.f32.gmra.mxu0 %v1471
          %v1490 = vpop.f32.mrf.mxu0
          %v1491 = vadd.f32 %v1468, %v1490
          %1492 = vdwg.mxu0
          %1493 = vst [vmem:[#allocation5] sm:$0xff] %v1491
        $region100: #{gptj_forward.1} parent=91 // pred_fallthru
          _
        // Predicated region
        $region101: #{gptj_forward.1} parent=91 // pred_check
          %p1494 = pneg %p474
        $region102: #{gptj_forward.1} parent=91 // pred_check_branch
          %1496 = sbr.rel (%p1494) target = $region104
        $region103: #{gptj_forward.1} parent=91 // pred_region
          %1498 = vsyncadd [#allocation4], 0
          %s1500 = sshll.u32 [#allocation3], 4
          %s1501 = int_to_ptr.vmem [resolvable:$true] %s1500
          %s1502 = sshll.u32 %s18, 4
          %s1503 = int_to_ptr.hbm [resolvable:$true] %s1502
          %1505 = dma.vmem_to_hbm [thread:$0]  %s1501, 128, %s1503, [#allocation4]
        $region104: #{gptj_forward.1} parent=91 // pred_fallthru
          _
        // Predicated region
        $region105: #{gptj_forward.1} parent=91 // pred_check
          %p1506 = pneg %p495
        $region106: #{gptj_forward.1} parent=91 // pred_check_branch
          %1508 = sbr.rel (%p1506) target = $region108
        $region107: #{gptj_forward.1} parent=91 // pred_region
          %1510 = vsyncadd [#allocation6], 0
          %s1512 = sshll.u32 [#allocation5], 4
          %s1513 = int_to_ptr.vmem [resolvable:$true] %s1512
          %s1514 = sshll.u32 %s19, 4
          %s1515 = int_to_ptr.hbm [resolvable:$true] %s1514
          %1517 = dma.vmem_to_hbm [thread:$0]  %s1513, 128, %s1515, [#allocation6]
        $region108: #{gptj_forward.1} parent=91 // pred_fallthru
          _
        // Predicated region
        $region109: #{gptj_forward.1} parent=91 // pred_check
          %p1518 = pneg %p474
        $region110: #{gptj_forward.1} parent=91 // pred_check_branch
          %1520 = sbr.rel (%p1518) target = $region112
        $region111: #{gptj_forward.1} parent=91 // pred_region
          %1522 = dma.done [#allocation4], 128
        $region112: #{gptj_forward.1} parent=91 // pred_fallthru
          _
        // Predicated region
        $region113: #{gptj_forward.1} parent=91 // pred_check
          %p1523 = pneg %p495
        $region114: #{gptj_forward.1} parent=91 // pred_check_branch
          %1525 = sbr.rel (%p1523) target = $region116
        $region115: #{gptj_forward.1} parent=91 // pred_region
          %1527 = dma.done [#allocation6], 128
        $region116: #{gptj_forward.1} parent=91 // pred_fallthru
          _
      $region92: #{gptj_forward.1} parent=5 // pred_fallthru
        _
      %p1528 = scmp.le.s32.totalorder 2, %s28
      // Predicated region
      $region117: #{gptj_forward.1} parent=5 // pred_check
        %p1529 = pneg %p1528
      $region118: #{gptj_forward.1} parent=5 // pred_check_branch
        %1531 = sbr.rel (%p1529) target = $region120
      $region119: #{gptj_forward.1} parent=5 // pred_region
        %s1532 = ssub.s32 %s28, 2
      $region120: #{gptj_forward.1} parent=5 // pred_fallthru
        _
    $region6: #{gptj_forward.1} parent=1 // loop_footer
      %s32 = sadd.s32 1, %s28
    $region7: #{gptj_forward.1} parent=1 // loop_footer_branch
      %27 = sbr.rel target = $region3
    $region8: #{gptj_forward.1} parent=1 // loop_exit
      _
    %1533 = vsyncpa [#allocation4], 1
    %s1534 = scalar_lea.sflag [#allocation4], 1
    %1535 = vsyncpa %s1534, 1
    %1536 = vsyncpa [#allocation6], 1

</llo_original>
